<compile_context>
chip_gen: v7x
topology: tpu7x:2x2x1
jax: 0.10.0
libtpu: 0.0.40
codegen_flags: <defaults>
</compile_context>

<pallas_src>
import numpy as np
import jax
import jax.numpy as jnp
from jax.experimental import pallas as pl
from jax.experimental.pallas import tpu as pltpu

EPS_BN = 1e-5
VMEM_LIMIT = 64 * 1024 * 1024   # explicit scoped-VMEM cap (safe on v5e/v6e/v7x)


def _vspec():
    return pl.BlockSpec(memory_space=pltpu.MemorySpace.VMEM)


# ---------------- fused encoder: ChebConv stack + tanh + fresh-BN + pooling epilogue ----------------
def make_encoder_kernel(K, num_layers, B, n):
    def kernel(s_ref, x_ref, w0_ref, b0_ref, ws_ref, bs_ref, pm_ref, pb_ref,
               out_main_ref, out_back_ref):
        # block-diagonal S @ T : per-graph (n,n)@(n,C) bf16 dots, f32 accumulation
        def smul(t):
            tb = t.astype(jnp.bfloat16)
            parts = [jnp.dot(s_ref[b], tb[b * n:(b + 1) * n],
                             preferred_element_type=jnp.float32) for b in range(B)]
            return jnp.concatenate(parts, axis=0)

        h = x_ref[...]                                      # (N, 3) f32
        for layer in range(num_layers):
            w = w0_ref[...] if layer == 0 else ws_ref[layer - 1]   # (K*c_in, H)
            bia = b0_ref[...] if layer == 0 else bs_ref[layer - 1] # (1, H)
            # Chebyshev basis, then one wide dot with the stacked weight
            t_prev = h
            t_list = [t_prev]
            if K > 1:
                t_cur = smul(t_prev)
                t_list.append(t_cur)
                for _ in range(2, K):
                    t_next = 2.0 * smul(t_cur) - t_prev
                    t_list.append(t_next)
                    t_prev, t_cur = t_cur, t_next
            t_all = jnp.concatenate(t_list, axis=-1)        # (N, K*c_in)
            z = jnp.dot(t_all, w, preferred_element_type=jnp.float32) + bia
            z = jnp.tanh(z)
            # fresh nn.BatchNorm1d(x.size(1)) => training-mode batch stats over ALL nodes,
            # weight=1, bias=0, biased variance.  (Global across graphs, as in torch.)
            mean = jnp.mean(z, axis=0, keepdims=True)
            var = jnp.mean((z - mean) ** 2, axis=0, keepdims=True)
            h = (z - mean) * jax.lax.rsqrt(var + EPS_BN)
            # dropout: identity in eval mode
        # pooling epilogue: mask selection + AdaptiveAvgPool2d folded into P_main / P_back
        out_main_ref[...] = jnp.dot(pm_ref[...], h, preferred_element_type=jnp.float32)
        out_back_ref[...] = jnp.dot(pb_ref[...], h, preferred_element_type=jnp.float32)

    return kernel


def encoder_stack(s_stack, x, params, Pm, Pb, K, num_layers, B, n, window, hidden):
    return pl.pallas_call(
        make_encoder_kernel(K, num_layers, B, n),
        out_shape=(jax.ShapeDtypeStruct((B * window, hidden), jnp.float32),
                   jax.ShapeDtypeStruct((B * window, hidden), jnp.float32)),
        in_specs=[_vspec()] * 8,
        out_specs=(_vspec(), _vspec()),
        compiler_params=pltpu.CompilerParams(vmem_limit_bytes=VMEM_LIMIT),
    )(s_stack, x, params["enc_w0"], params["enc_b0"], params["enc_ws"], params["enc_bs"],
      Pm, Pb)


# ------------- fused reference branch: ChebConv stack + tanh + fresh-BN + (xr @ W0_xr) epilogue -------------
def make_ref_kernel(K, num_layers_ref):
    def kernel(s_ref, x_ref, w0_ref, b0_ref, ws_ref, bs_ref, w0xr_ref, out_ref):
        s = s_ref[...]                                      # (R, R) bf16
        h = x_ref[...]                                      # (R, 3) f32

        def smul(t):
            return jnp.dot(s, t.astype(jnp.bfloat16), preferred_element_type=jnp.float32)

        for layer in range(num_layers_ref):
            w = w0_ref[...] if layer == 0 else ws_ref[layer - 1]
            bia = b0_ref[...] if layer == 0 else bs_ref[layer - 1]
            t_prev = h
            t_list = [t_prev]
            if K > 1:
                t_cur = smul(t_prev)
                t_list.append(t_cur)
                for _ in range(2, K):
                    t_next = 2.0 * smul(t_cur) - t_prev
                    t_list.append(t_next)
                    t_prev, t_cur = t_cur, t_next
            t_all = jnp.concatenate(t_list, axis=-1)
            z = jnp.dot(t_all, w, preferred_element_type=jnp.float32) + bia
            z = jnp.tanh(z)
            mean = jnp.mean(z, axis=0, keepdims=True)
            var = jnp.mean((z - mean) ** 2, axis=0, keepdims=True)
            h = (z - mean) * jax.lax.rsqrt(var + EPS_BN)
        # fold the xr-half of the MLP's first Linear (bias-free) here -> lane-dense (R, nin_pad)
        out_ref[...] = jnp.dot(h, w0xr_ref[...], preferred_element_type=jnp.float32)

    return kernel


def reference_stack(s_ref, x_ref, params, K, num_layers, nin_pad):
    R = x_ref.shape[0]
    return pl.pallas_call(
        make_ref_kernel(K, num_layers + 1),
        out_shape=jax.ShapeDtypeStruct((R, nin_pad), jnp.float32),
        in_specs=[_vspec()] * 7,
        out_specs=_vspec(),
        compiler_params=pltpu.CompilerParams(vmem_limit_bytes=VMEM_LIMIT),
    )(s_ref, x_ref, params["ref_w0"], params["ref_b0"], params["ref_ws"], params["ref_bs"],
      params["mlp"]["w0_xr"])


# --------------------------------------------- MLP head ---------------------------------------------
def mlp_kernel(axr_ref, fp_ref, w0fp_ref, s0_ref, t0_ref, w1_ref, s1_ref, t1_ref,
               w2_ref, b2_ref, out_ref):
    # full_pooling half of the first Linear: computed once per batch element (tiny)
    c = jnp.dot(fp_ref[0], w0fp_ref[...], preferred_element_type=jnp.float32)    # (1, P)
    h = axr_ref[...] + c                                                         # (tr, P)
    h = jnp.maximum(h * s0_ref[...] + t0_ref[...], 0.0)      # eval BatchNorm1d + ReLU
    h = jnp.dot(h, w1_ref[...], preferred_element_type=jnp.float32)
    h = jnp.maximum(h * s1_ref[...] + t1_ref[...], 0.0)      # eval BatchNorm1d + ReLU
    h = jnp.dot(h, w2_ref[...], preferred_element_type=jnp.float32) + b2_ref[...]
    out_ref[0] = h


def _row_tile(R):
    for t in (512, 256, 128, 64, 32, 16, 8):
        if R % t == 0:
            return t
    return R


def mlp_head(a_xr, full_pooling, p):
    R, P = a_xr.shape
    B, F2 = full_pooling.shape
    fp3 = full_pooling.reshape(B, 1, F2)
    tr = _row_tile(R)
    grid = (R // tr, B)     # residue row tiles outer, batch inner (a_xr block stays resident)
    out = pl.pallas_call(
        mlp_kernel,
        out_shape=jax.ShapeDtypeStruct((B, R, 3), jnp.float32),
        grid=grid,
        in_specs=[
            pl.BlockSpec((tr, P), lambda r, b: (r, 0)),        # a_xr = xr @ W0_xr (precomputed)
            pl.BlockSpec((1, 1, F2), lambda r, b: (b, 0, 0)),  # full_pooling row
            pl.BlockSpec((F2, P), lambda r, b: (0, 0)),        # W0_fp
            pl.BlockSpec((1, P), lambda r, b: (0, 0)),         # bn0 scale
            pl.BlockSpec((1, P), lambda r, b: (0, 0)),         # bn0 shift
            pl.BlockSpec((P, P), lambda r, b: (0, 0)),         # W1
            pl.BlockSpec((1, P), lambda r, b: (0, 0)),         # bn1 scale
            pl.BlockSpec((1, P), lambda r, b: (0, 0)),         # bn1 shift
            pl.BlockSpec((P, 3), lambda r, b: (0, 0)),         # W2
            pl.BlockSpec((1, 3), lambda r, b: (0, 0)),         # b2
        ],
        out_specs=pl.BlockSpec((1, tr, 3), lambda r, b: (b, r, 0)),
        compiler_params=pltpu.CompilerParams(
            dimension_semantics=("parallel", "parallel"),
            vmem_limit_bytes=VMEM_LIMIT),
    )(a_xr, fp3, p["w0_fp"], p["bn0_scale"], p["bn0_shift"],
      p["w1"], p["bn1_scale"], p["bn1_shift"], p["w2"], p["b2"])
    return out.reshape(B * R, 3)


# ------------------------------------------ parameter init ------------------------------------------
def init_params(key, hidden, K, window, num_layers):
    keys = jax.random.split(key, 32)
    it = iter(keys)

    def rnd(shape, scale=0.1):
        return jax.random.normal(next(it), shape, jnp.float32) * scale

    # ChebConv weights are stored pre-stacked as (K*c_in, c_out) to match T_all = concat(T_0..T_{K-1}).
    enc_w0 = rnd((K, 3, hidden)).reshape(K * 3, hidden)
    enc_b0 = rnd((hidden,)).reshape(1, hidden)
    n_extra_enc = max(1, num_layers - 1)
    enc_ws = rnd((n_extra_enc, K, hidden, hidden)).reshape(n_extra_enc, K * hidden, hidden)
    enc_bs = rnd((n_extra_enc, hidden)).reshape(n_extra_enc, 1, hidden)

    ref_w0 = rnd((K, 3, hidden)).reshape(K * 3, hidden)
    ref_b0 = rnd((hidden,)).reshape(1, hidden)
    n_extra_ref = max(1, num_layers)           # convRef has num_layers + 1 layers total
    ref_ws = rnd((n_extra_ref, K, hidden, hidden)).reshape(n_extra_ref, K * hidden, hidden)
    ref_bs = rnd((n_extra_ref, hidden)).reshape(n_extra_ref, 1, hidden)

    nin = 2 * window * hidden + hidden
    nin_pad = ((nin + 127) // 128) * 128
    w0 = rnd((nin, nin))
    w1 = rnd((nin, nin))
    w2 = rnd((nin, 3))
    b2 = rnd((3,)).reshape(1, 3)
    bn_scale = 1.0 / np.sqrt(1.0 + EPS_BN)     # eval BN, default stats (rm=0, rv=1, gamma=1, beta=0)

    def pad2(a, rows, cols):
        return jnp.pad(a, ((0, rows - a.shape[0]), (0, cols - a.shape[1])))

    mlp = {
        # first Linear split along the concat([x_ref, full_pooling], -1) feature layout:
        # rows [0:hidden] multiply x_ref, rows [hidden:] multiply full_pooling.  Zero-padded to 128.
        "w0_xr": pad2(w0[:hidden], hidden, nin_pad),
        "w0_fp": pad2(w0[hidden:], nin - hidden, nin_pad),
        "w1": pad2(w1, nin_pad, nin_pad),
        "w2": pad2(w2, nin_pad, 3),
        "b2": b2,
        "bn0_scale": jnp.full((1, nin_pad), bn_scale, jnp.float32),
        "bn0_shift": jnp.zeros((1, nin_pad), jnp.float32),
        "bn1_scale": jnp.full((1, nin_pad), bn_scale, jnp.float32),
        "bn1_shift": jnp.zeros((1, nin_pad), jnp.float32),
    }
    # NOTE: bano1/bano2/bano3/banoDec from __init__ are unused in the torch forward.
    return {"enc_w0": enc_w0, "enc_b0": enc_b0, "enc_ws": enc_ws, "enc_bs": enc_bs,
            "ref_w0": ref_w0, "ref_b0": ref_b0, "ref_ws": ref_ws, "ref_bs": ref_bs,
            "mlp": mlp, "nin_pad": nin_pad}


# ------------------------------------------- graph helpers -------------------------------------------
def ring_scaled_laplacian(n):
    A = np.zeros((n, n), np.float32)
    for i in range(n):
        j = (i + 1) % n
        A[i, j] = 1.0
        A[j, i] = 1.0
    deg = A.sum(1)
    dinv = 1.0 / np.sqrt(np.maximum(deg, 1e-12))
    # ChebConv scaled Laplacian with lambda_max=2:  2L/lambda_max - I = -D^{-1/2} A D^{-1/2}
    return -(dinv[:, None] * A * dinv[None, :])


def build_pool_matrices(mask, batch_size, window):
    """Fold x[~mask]/x[mask] gathers + reshape(B,-1,H) + AdaptiveAvgPool2d((window,H)) into two
    (B*window, N) pooling matrices (exactly replicates the torch gather/reshape/pool semantics)."""
    mask = np.asarray(mask, bool).reshape(-1)
    N = mask.size

    def build(idx):
        assert idx.size % batch_size == 0, "torch reshape(len(batch),-1,H) requires divisibility"
        idx = idx.reshape(batch_size, -1)
        per = idx.shape[1]
        P = np.zeros((batch_size * window, N), np.float32)
        for b in range(batch_size):
            for w in range(window):
                s = (w * per) // window
                e = -(-((w + 1) * per) // window)     # ceil
                P[b * window + w, idx[b, s:e]] = 1.0 / (e - s)
        return jnp.asarray(P)

    return build(np.nonzero(~mask)[0]), build(np.nonzero(mask)[0])   # (P_main, P_back)


# -------------------------------------------- HNO forward --------------------------------------------
def hno_forward(params, x, s_stack, mask, batch_size, data_ref_x, s_ref,
                window, K, num_layers, hidden):
    B = batch_size
    N = x.shape[0]
    n = N // B
    Pm, Pb = build_pool_matrices(mask, B, window)

    # fused encoder ChebConv stack (+ tanh + fresh-BN + mask/pool epilogue)
    pooled_main, pooled_back = encoder_stack(s_stack, x, params, Pm, Pb,
                                             K, num_layers, B, n, window, hidden)
    x_main = pooled_main.reshape(B, window, hidden)
    x_back = pooled_back.reshape(B, window, hidden)
    full_pooling = jnp.concatenate([x_main, x_back], axis=1).reshape(B, -1)

    # fused reference ChebConv stack (+ xr @ W0_xr epilogue, lane-dense (R, 128))
    a_xr = reference_stack(s_ref, data_ref_x, params, K, num_layers, params["nin_pad"])

    # MLP head without materializing the (B*R, nin) broadcasted concat
    result = mlp_head(a_xr, full_pooling, params["mlp"])
    return result, x_back, x_main


# ------------------------------------------------ main ------------------------------------------------
if __name__ == "__main__":
    hidden = 8          # hiddens_dims
    K = 3               # Chebyshev order
    window = 4          # window_size
    num_layers = 2
    B = 2               # number of graphs in the batch
    nodes_per_graph = 16
    NUM_RESIDUES = 8    # module constant (2191) reduced for the small synthetic test

    key = jax.random.PRNGKey(0)
    kx, kref, kp = jax.random.split(key, 3)

    N = B * nodes_per_graph
    x = jax.random.normal(kx, (N, 3), jnp.float32)
    data_ref_x = jax.random.normal(kref, (NUM_RESIDUES, 3), jnp.float32)

    # per-graph scaled-Laplacian blocks (block-diagonal batched operator), stored in bf16
    S_single = ring_scaled_laplacian(nodes_per_graph)
    S_stack = jnp.asarray(np.stack([S_single] * B), jnp.bfloat16)
    S_ref = jnp.asarray(ring_scaled_laplacian(NUM_RESIDUES), jnp.bfloat16)

    # mask: True = backbone atom, False = main atom; alternating so per-graph counts are equal
    mask = np.tile(np.array([True, False] * (nodes_per_graph // 2)), B)

    params = init_params(kp, hidden, K, window, num_layers)

    result, x_back, x_main = hno_forward(params, x, S_stack, mask, B,
                                         data_ref_x, S_ref, window, K, num_layers, hidden)
    jax.block_until_ready((result, x_back, x_main))

    assert result.shape == (B * NUM_RESIDUES, 3)
    assert x_back.shape == (B, window, hidden)
    assert x_main.shape == (B, window, hidden)
    assert np.all(np.isfinite(np.asarray(result)))
    print("KERNEL_OK")
</pallas_src>

<mosaic_0001>
module attributes {stable_mosaic.version = 11 : i64} {
  func.func @kernel(%arg0: memref<2x16x16xbf16, #tpu.memory_space<vmem>>, %arg1: memref<32x3xf32, #tpu.memory_space<vmem>>, %arg2: memref<9x8xf32, #tpu.memory_space<vmem>>, %arg3: memref<1x8xf32, #tpu.memory_space<vmem>>, %arg4: memref<1x24x8xf32, #tpu.memory_space<vmem>>, %arg5: memref<1x1x8xf32, #tpu.memory_space<vmem>>, %arg6: memref<8x32xf32, #tpu.memory_space<vmem>>, %arg7: memref<8x32xf32, #tpu.memory_space<vmem>>, %arg8: memref<8x8xf32, #tpu.memory_space<vmem>>, %arg9: memref<8x8xf32, #tpu.memory_space<vmem>>) attributes {dimension_semantics = [], scalar_prefetch = 0 : i64, scratch_operands = 0 : i64, tpu.core_type = #tpu.core_type<tc>} {
    %c0 = arith.constant 0 : index
    %c0_0 = arith.constant 0 : index
    %0 = vector.load %arg1[%c0, %c0_0] : memref<32x3xf32, #tpu.memory_space<vmem>>, vector<32x3xf32>
    %c0_1 = arith.constant 0 : index
    %c0_2 = arith.constant 0 : index
    %1 = vector.load %arg2[%c0_1, %c0_2] : memref<9x8xf32, #tpu.memory_space<vmem>>, vector<9x8xf32>
    %c0_3 = arith.constant 0 : index
    %c0_4 = arith.constant 0 : index
    %2 = vector.load %arg3[%c0_3, %c0_4] : memref<1x8xf32, #tpu.memory_space<vmem>>, vector<1x8xf32>
    %3 = arith.truncf %0 : vector<32x3xf32> to vector<32x3xbf16>
    %c0_5 = arith.constant 0 : index
    %c0_6 = arith.constant 0 : index
    %c0_7 = arith.constant 0 : index
    %4 = vector.load %arg0[%c0_5, %c0_6, %c0_7] : memref<2x16x16xbf16, #tpu.memory_space<vmem>>, vector<1x16x16xbf16>
    %5 = vector.shape_cast %4 : vector<1x16x16xbf16> to vector<16x16xbf16>
    %6 = vector.extract_strided_slice %3 {offsets = [0, 0], sizes = [16, 3], strides = [1, 1]} : vector<32x3xbf16> to vector<16x3xbf16>
    %cst = arith.constant dense<0.000000e+00> : vector<16x3xf32>
    %7 = tpu.matmul %5, %6, %cst {dimension_numbers = #tpu.dot_dimension_numbers<[1], [0], [0], [1], [0, 0, 1, 1], [], []>} : vector<16x16xbf16>, vector<16x3xbf16>, vector<16x3xf32> -> vector<16x3xf32>
    %c1 = arith.constant 1 : index
    %c0_8 = arith.constant 0 : index
    %c0_9 = arith.constant 0 : index
    %8 = vector.load %arg0[%c1, %c0_8, %c0_9] : memref<2x16x16xbf16, #tpu.memory_space<vmem>>, vector<1x16x16xbf16>
    %9 = vector.shape_cast %8 : vector<1x16x16xbf16> to vector<16x16xbf16>
    %10 = vector.extract_strided_slice %3 {offsets = [16, 0], sizes = [16, 3], strides = [1, 1]} : vector<32x3xbf16> to vector<16x3xbf16>
    %cst_10 = arith.constant dense<0.000000e+00> : vector<16x3xf32>
    %11 = tpu.matmul %9, %10, %cst_10 {dimension_numbers = #tpu.dot_dimension_numbers<[1], [0], [0], [1], [0, 0, 1, 1], [], []>} : vector<16x16xbf16>, vector<16x3xbf16>, vector<16x3xf32> -> vector<16x3xf32>
    %12 = tpu.concatenate %7, %11 in 0 : vector<16x3xf32>, vector<16x3xf32> -> vector<32x3xf32>
    %13 = arith.truncf %12 : vector<32x3xf32> to vector<32x3xbf16>
    %c0_11 = arith.constant 0 : index
    %c0_12 = arith.constant 0 : index
    %c0_13 = arith.constant 0 : index
    %14 = vector.load %arg0[%c0_11, %c0_12, %c0_13] : memref<2x16x16xbf16, #tpu.memory_space<vmem>>, vector<1x16x16xbf16>
    %15 = vector.shape_cast %14 : vector<1x16x16xbf16> to vector<16x16xbf16>
    %16 = vector.extract_strided_slice %13 {offsets = [0, 0], sizes = [16, 3], strides = [1, 1]} : vector<32x3xbf16> to vector<16x3xbf16>
    %cst_14 = arith.constant dense<0.000000e+00> : vector<16x3xf32>
    %17 = tpu.matmul %15, %16, %cst_14 {dimension_numbers = #tpu.dot_dimension_numbers<[1], [0], [0], [1], [0, 0, 1, 1], [], []>} : vector<16x16xbf16>, vector<16x3xbf16>, vector<16x3xf32> -> vector<16x3xf32>
    %c1_15 = arith.constant 1 : index
    %c0_16 = arith.constant 0 : index
    %c0_17 = arith.constant 0 : index
    %18 = vector.load %arg0[%c1_15, %c0_16, %c0_17] : memref<2x16x16xbf16, #tpu.memory_space<vmem>>, vector<1x16x16xbf16>
    %19 = vector.shape_cast %18 : vector<1x16x16xbf16> to vector<16x16xbf16>
    %20 = vector.extract_strided_slice %13 {offsets = [16, 0], sizes = [16, 3], strides = [1, 1]} : vector<32x3xbf16> to vector<16x3xbf16>
    %cst_18 = arith.constant dense<0.000000e+00> : vector<16x3xf32>
    %21 = tpu.matmul %19, %20, %cst_18 {dimension_numbers = #tpu.dot_dimension_numbers<[1], [0], [0], [1], [0, 0, 1, 1], [], []>} : vector<16x16xbf16>, vector<16x3xbf16>, vector<16x3xf32> -> vector<16x3xf32>
    %22 = tpu.concatenate %17, %21 in 0 : vector<16x3xf32>, vector<16x3xf32> -> vector<32x3xf32>
    %cst_19 = arith.constant 2.000000e+00 : f32
    %23 = vector.broadcast %cst_19 : f32 to vector<32x3xf32>
    %24 = arith.mulf %23, %22 : vector<32x3xf32>
    %25 = arith.subf %24, %0 : vector<32x3xf32>
    %26 = tpu.concatenate %0, %12, %25 in 1 : vector<32x3xf32>, vector<32x3xf32>, vector<32x3xf32> -> vector<32x9xf32>
    %cst_20 = arith.constant dense<0.000000e+00> : vector<32x8xf32>
    %27 = tpu.matmul %26, %1, %cst_20 {dimension_numbers = #tpu.dot_dimension_numbers<[1], [0], [0], [1], [0, 0, 1, 1], [], []>} : vector<32x9xf32>, vector<9x8xf32>, vector<32x8xf32> -> vector<32x8xf32>
    %28 = vector.broadcast %2 : vector<1x8xf32> to vector<32x8xf32>
    %29 = arith.addf %27, %28 : vector<32x8xf32>
    %30 = math.tanh %29 : vector<32x8xf32>
    %cst_21 = arith.constant dense<0.000000e+00> : vector<8xf32>
    %31 = vector.multi_reduction <add>, %30, %cst_21 [0] : vector<32x8xf32> to vector<8xf32>
    %32 = vector.shape_cast %31 : vector<8xf32> to vector<1x8xf32>
    %cst_22 = arith.constant 3.200000e+01 : f32
    %33 = vector.broadcast %cst_22 : f32 to vector<1x8xf32>
    %34 = arith.divf %32, %33 : vector<1x8xf32>
    %35 = vector.broadcast %34 : vector<1x8xf32> to vector<32x8xf32>
    %36 = arith.subf %30, %35 : vector<32x8xf32>
    %37 = arith.mulf %36, %36 : vector<32x8xf32>
    %cst_23 = arith.constant dense<0.000000e+00> : vector<8xf32>
    %38 = vector.multi_reduction <add>, %37, %cst_23 [0] : vector<32x8xf32> to vector<8xf32>
    %39 = vector.shape_cast %38 : vector<8xf32> to vector<1x8xf32>
    %cst_24 = arith.constant 3.200000e+01 : f32
    %40 = vector.broadcast %cst_24 : f32 to vector<1x8xf32>
    %41 = arith.divf %39, %40 : vector<1x8xf32>
    %42 = vector.broadcast %34 : vector<1x8xf32> to vector<32x8xf32>
    %43 = arith.subf %30, %42 : vector<32x8xf32>
    %cst_25 = arith.constant 9.99999974E-6 : f32
    %44 = vector.broadcast %cst_25 : f32 to vector<1x8xf32>
    %45 = arith.addf %41, %44 : vector<1x8xf32>
    %46 = math.rsqrt %45 : vector<1x8xf32>
    %47 = vector.broadcast %46 : vector<1x8xf32> to vector<32x8xf32>
    %48 = arith.mulf %43, %47 : vector<32x8xf32>
    %c0_26 = arith.constant 0 : index
    %c0_27 = arith.constant 0 : index
    %c0_28 = arith.constant 0 : index
    %49 = vector.load %arg4[%c0_26, %c0_27, %c0_28] : memref<1x24x8xf32, #tpu.memory_space<vmem>>, vector<1x24x8xf32>
    %50 = vector.shape_cast %49 : vector<1x24x8xf32> to vector<24x8xf32>
    %c0_29 = arith.constant 0 : index
    %c0_30 = arith.constant 0 : index
    %c0_31 = arith.constant 0 : index
    %51 = vector.load %arg5[%c0_29, %c0_30, %c0_31] : memref<1x1x8xf32, #tpu.memory_space<vmem>>, vector<1x1x8xf32>
    %52 = vector.shape_cast %51 : vector<1x1x8xf32> to vector<1x8xf32>
    %53 = arith.truncf %48 : vector<32x8xf32> to vector<32x8xbf16>
    %c0_32 = arith.constant 0 : index
    %c0_33 = arith.constant 0 : index
    %c0_34 = arith.constant 0 : index
    %54 = vector.load %arg0[%c0_32, %c0_33, %c0_34] : memref<2x16x16xbf16, #tpu.memory_space<vmem>>, vector<1x16x16xbf16>
    %55 = vector.shape_cast %54 : vector<1x16x16xbf16> to vector<16x16xbf16>
    %56 = vector.extract_strided_slice %53 {offsets = [0, 0], sizes = [16, 8], strides = [1, 1]} : vector<32x8xbf16> to vector<16x8xbf16>
    %cst_35 = arith.constant dense<0.000000e+00> : vector<16x8xf32>
    %57 = tpu.matmul %55, %56, %cst_35 {dimension_numbers = #tpu.dot_dimension_numbers<[1], [0], [0], [1], [0, 0, 1, 1], [], []>} : vector<16x16xbf16>, vector<16x8xbf16>, vector<16x8xf32> -> vector<16x8xf32>
    %c1_36 = arith.constant 1 : index
    %c0_37 = arith.constant 0 : index
    %c0_38 = arith.constant 0 : index
    %58 = vector.load %arg0[%c1_36, %c0_37, %c0_38] : memref<2x16x16xbf16, #tpu.memory_space<vmem>>, vector<1x16x16xbf16>
    %59 = vector.shape_cast %58 : vector<1x16x16xbf16> to vector<16x16xbf16>
    %60 = vector.extract_strided_slice %53 {offsets = [16, 0], sizes = [16, 8], strides = [1, 1]} : vector<32x8xbf16> to vector<16x8xbf16>
    %cst_39 = arith.constant dense<0.000000e+00> : vector<16x8xf32>
    %61 = tpu.matmul %59, %60, %cst_39 {dimension_numbers = #tpu.dot_dimension_numbers<[1], [0], [0], [1], [0, 0, 1, 1], [], []>} : vector<16x16xbf16>, vector<16x8xbf16>, vector<16x8xf32> -> vector<16x8xf32>
    %62 = tpu.concatenate %57, %61 in 0 : vector<16x8xf32>, vector<16x8xf32> -> vector<32x8xf32>
    %63 = arith.truncf %62 : vector<32x8xf32> to vector<32x8xbf16>
    %c0_40 = arith.constant 0 : index
    %c0_41 = arith.constant 0 : index
    %c0_42 = arith.constant 0 : index
    %64 = vector.load %arg0[%c0_40, %c0_41, %c0_42] : memref<2x16x16xbf16, #tpu.memory_space<vmem>>, vector<1x16x16xbf16>
    %65 = vector.shape_cast %64 : vector<1x16x16xbf16> to vector<16x16xbf16>
    %66 = vector.extract_strided_slice %63 {offsets = [0, 0], sizes = [16, 8], strides = [1, 1]} : vector<32x8xbf16> to vector<16x8xbf16>
    %cst_43 = arith.constant dense<0.000000e+00> : vector<16x8xf32>
    %67 = tpu.matmul %65, %66, %cst_43 {dimension_numbers = #tpu.dot_dimension_numbers<[1], [0], [0], [1], [0, 0, 1, 1], [], []>} : vector<16x16xbf16>, vector<16x8xbf16>, vector<16x8xf32> -> vector<16x8xf32>
    %c1_44 = arith.constant 1 : index
    %c0_45 = arith.constant 0 : index
    %c0_46 = arith.constant 0 : index
    %68 = vector.load %arg0[%c1_44, %c0_45, %c0_46] : memref<2x16x16xbf16, #tpu.memory_space<vmem>>, vector<1x16x16xbf16>
    %69 = vector.shape_cast %68 : vector<1x16x16xbf16> to vector<16x16xbf16>
    %70 = vector.extract_strided_slice %63 {offsets = [16, 0], sizes = [16, 8], strides = [1, 1]} : vector<32x8xbf16> to vector<16x8xbf16>
    %cst_47 = arith.constant dense<0.000000e+00> : vector<16x8xf32>
    %71 = tpu.matmul %69, %70, %cst_47 {dimension_numbers = #tpu.dot_dimension_numbers<[1], [0], [0], [1], [0, 0, 1, 1], [], []>} : vector<16x16xbf16>, vector<16x8xbf16>, vector<16x8xf32> -> vector<16x8xf32>
    %72 = tpu.concatenate %67, %71 in 0 : vector<16x8xf32>, vector<16x8xf32> -> vector<32x8xf32>
    %cst_48 = arith.constant 2.000000e+00 : f32
    %73 = vector.broadcast %cst_48 : f32 to vector<32x8xf32>
    %74 = arith.mulf %73, %72 : vector<32x8xf32>
    %75 = arith.subf %74, %48 : vector<32x8xf32>
    %76 = tpu.concatenate %48, %62, %75 in 1 : vector<32x8xf32>, vector<32x8xf32>, vector<32x8xf32> -> vector<32x24xf32>
    %cst_49 = arith.constant dense<0.000000e+00> : vector<32x8xf32>
    %77 = tpu.matmul %76, %50, %cst_49 {dimension_numbers = #tpu.dot_dimension_numbers<[1], [0], [0], [1], [0, 0, 1, 1], [], []>} : vector<32x24xf32>, vector<24x8xf32>, vector<32x8xf32> -> vector<32x8xf32>
    %78 = vector.broadcast %52 : vector<1x8xf32> to vector<32x8xf32>
    %79 = arith.addf %77, %78 : vector<32x8xf32>
    %80 = math.tanh %79 : vector<32x8xf32>
    %cst_50 = arith.constant dense<0.000000e+00> : vector<8xf32>
    %81 = vector.multi_reduction <add>, %80, %cst_50 [0] : vector<32x8xf32> to vector<8xf32>
    %82 = vector.shape_cast %81 : vector<8xf32> to vector<1x8xf32>
    %cst_51 = arith.constant 3.200000e+01 : f32
    %83 = vector.broadcast %cst_51 : f32 to vector<1x8xf32>
    %84 = arith.divf %82, %83 : vector<1x8xf32>
    %85 = vector.broadcast %84 : vector<1x8xf32> to vector<32x8xf32>
    %86 = arith.subf %80, %85 : vector<32x8xf32>
    %87 = arith.mulf %86, %86 : vector<32x8xf32>
    %cst_52 = arith.constant dense<0.000000e+00> : vector<8xf32>
    %88 = vector.multi_reduction <add>, %87, %cst_52 [0] : vector<32x8xf32> to vector<8xf32>
    %89 = vector.shape_cast %88 : vector<8xf32> to vector<1x8xf32>
    %cst_53 = arith.constant 3.200000e+01 : f32
    %90 = vector.broadcast %cst_53 : f32 to vector<1x8xf32>
    %91 = arith.divf %89, %90 : vector<1x8xf32>
    %92 = vector.broadcast %84 : vector<1x8xf32> to vector<32x8xf32>
    %93 = arith.subf %80, %92 : vector<32x8xf32>
    %cst_54 = arith.constant 9.99999974E-6 : f32
    %94 = vector.broadcast %cst_54 : f32 to vector<1x8xf32>
    %95 = arith.addf %91, %94 : vector<1x8xf32>
    %96 = math.rsqrt %95 : vector<1x8xf32>
    %97 = vector.broadcast %96 : vector<1x8xf32> to vector<32x8xf32>
    %98 = arith.mulf %93, %97 : vector<32x8xf32>
    %c0_55 = arith.constant 0 : index
    %c0_56 = arith.constant 0 : index
    %99 = vector.load %arg6[%c0_55, %c0_56] : memref<8x32xf32, #tpu.memory_space<vmem>>, vector<8x32xf32>
    %cst_57 = arith.constant dense<0.000000e+00> : vector<8x8xf32>
    %100 = tpu.matmul %99, %98, %cst_57 {dimension_numbers = #tpu.dot_dimension_numbers<[1], [0], [0], [1], [0, 0, 1, 1], [], []>} : vector<8x32xf32>, vector<32x8xf32>, vector<8x8xf32> -> vector<8x8xf32>
    %c0_58 = arith.constant 0 : index
    %c0_59 = arith.constant 0 : index
    %101 = vector.load %arg8[%c0_58, %c0_59] : memref<8x8xf32, #tpu.memory_space<vmem>>, vector<8x8xf32>
    tpu.vector_store %arg8[%c0_58, %c0_59], %100 {strides = array<i32>} : memref<8x8xf32, #tpu.memory_space<vmem>>, vector<8x8xf32>,
    %c0_60 = arith.constant 0 : index
    %c0_61 = arith.constant 0 : index
    %102 = vector.load %arg7[%c0_60, %c0_61] : memref<8x32xf32, #tpu.memory_space<vmem>>, vector<8x32xf32>
    %cst_62 = arith.constant dense<0.000000e+00> : vector<8x8xf32>
    %103 = tpu.matmul %102, %98, %cst_62 {dimension_numbers = #tpu.dot_dimension_numbers<[1], [0], [0], [1], [0, 0, 1, 1], [], []>} : vector<8x32xf32>, vector<32x8xf32>, vector<8x8xf32> -> vector<8x8xf32>
    %c0_63 = arith.constant 0 : index
    %c0_64 = arith.constant 0 : index
    %104 = vector.load %arg9[%c0_63, %c0_64] : memref<8x8xf32, #tpu.memory_space<vmem>>, vector<8x8xf32>
    tpu.vector_store %arg9[%c0_63, %c0_64], %103 {strides = array<i32>} : memref<8x8xf32, #tpu.memory_space<vmem>>, vector<8x8xf32>,
    return
  }
}

</mosaic_0001>

<llo_original>
// kernel: tpu_custom_call.1
$region0: #{tpu_custom_call.1}
  #allocation0 [shape = 'u32[]', space=smem, size = 0x4, offset = 0x4, fixed_abs, tag = 'smem constant byte address 0x4 - core index']
  #allocation1 [shape = 'u32[144,128]{1,0:T(1,128)}', space=vmem, size = 0x12000, scoped, tag = 'internal scratch']
  %s0 = inlined_call_operand.hbm [shape: bf16[2,16,16], index: 0, kind: input, shape index: {}]
  %s1 = inlined_call_operand.hbm [shape: f32[32,3], index: 1, kind: input, shape index: {}]
  %s2 = inlined_call_operand.hbm [shape: f32[9,8], index: 2, kind: input, shape index: {}]
  %s3 = inlined_call_operand.hbm [shape: f32[1,8], index: 3, kind: input, shape index: {}]
  %s4 = inlined_call_operand.hbm [shape: f32[1,24,8], index: 4, kind: input, shape index: {}]
  %s5 = inlined_call_operand.hbm [shape: f32[1,1,8], index: 5, kind: input, shape index: {}]
  %s6 = inlined_call_operand.hbm [shape: f32[8,32], index: 6, kind: input, shape index: {}]
  %s7 = inlined_call_operand.hbm [shape: f32[8,32], index: 7, kind: input, shape index: {}]
  %s8 = inlined_call_operand.hbm [shape: f32[8,8], index: 8, kind: output, shape index: {0}]
  %s9 = inlined_call_operand.hbm [shape: f32[8,8], index: 9, kind: output, shape index: {1}]
  %10 = xla_tuple %s8, %s9
  %s11 = sld [smem:[#allocation0]]
  $region82: #{tpu_custom_call.1} parent=0
    _
  %s13 = ssub.s32 1, %s11
  %s14 = scalar_select 0, %s13, %s11
  $region1: #{tpu_custom_call.1} parent=0
    #allocation2 [shape = 'u8[8192]{0}', space=vmem, size = 0x2000, scoped, tag = 'input window, operand 0, single buffered']
    #allocation3 [shape = 's32[1]{0}', space=sflag, size = 0x4, scoped, tag = 'scoped memory for tpu_custom_call.1']
    #allocation4 [shape = 's32[1]{0}', space=sflag, size = 0x4, scoped, tag = 'scoped memory for tpu_custom_call.1']
    #allocation5 [shape = 'u8[16384]{0}', space=vmem, size = 0x4000, scoped, tag = 'input window, operand 1, single buffered']
    #allocation6 [shape = 's32[1]{0}', space=sflag, size = 0x4, scoped, tag = 'scoped memory for tpu_custom_call.1']
    #allocation7 [shape = 'u8[8192]{0}', space=vmem, size = 0x2000, scoped, tag = 'input window, operand 2, single buffered']
    #allocation8 [shape = 'u8[512]{0}', space=vmem, size = 0x400, scoped, tag = 'input window, operand 3, single buffered']
    #allocation9 [shape = 's32[1]{0}', space=sflag, size = 0x4, scoped, tag = 'scoped memory for tpu_custom_call.1']
    #allocation10 [shape = 'u8[12288]{0}', space=vmem, size = 0x3000, scoped, tag = 'input window, operand 4, single buffered']
    #allocation11 [shape = 'u8[512]{0}', space=vmem, size = 0x400, scoped, tag = 'input window, operand 5, single buffered']
    #allocation12 [shape = 's32[1]{0}', space=sflag, size = 0x4, scoped, tag = 'scoped memory for tpu_custom_call.1']
    #allocation13 [shape = 'u8[4096]{0}', space=vmem, size = 0x1000, scoped, tag = 'input window, operand 6, single buffered']
    #allocation14 [shape = 'u8[4096]{0}', space=vmem, size = 0x1000, scoped, tag = 'input window, operand 7, single buffered']
    #allocation15 [shape = 's32[1]{0}', space=sflag, size = 0x4, scoped, tag = 'scoped memory for tpu_custom_call.1']
    #allocation16 [shape = 'u8[4096]{0}', space=vmem, size = 0x1000, scoped, tag = 'output window, operand 0, single buffered']
    #allocation17 [shape = 'u8[4096]{0}', space=vmem, size = 0x1000, scoped, tag = 'output window, operand 1, single buffered']
    #allocation18 [shape = 's32[1]{0}', space=sflag, size = 0x4, scoped, tag = 'scoped memory for tpu_custom_call.1']
    %15 = vsyncpa [#allocation3], 0
    %16 = vsyncpa [#allocation6], 0
    %17 = vsyncpa [#allocation9], 0
    %18 = vsyncpa [#allocation12], 0
    %19 = vsyncpa [#allocation15], 0
    %20 = vsyncpa [#allocation4], 0
    %21 = vsyncpa [#allocation18], 0
    // Predicated region
    $region2: #{tpu_custom_call.1} parent=1 // pred_check
      _
    $region3: #{tpu_custom_call.1} parent=1 // pred_check_branch
      %23 = sbr.rel (0) target = $region5
    $region4: #{tpu_custom_call.1} parent=1 // pred_region
      %s25 = ssub.s32 256, 256
      %26 = vsyncadd [#allocation3], %s25
      %s27 = sshll.u32 [#allocation2], 4
      %s28 = int_to_ptr.vmem [resolvable:$true] %s27
      %33 = dma.hbm_to_vmem [thread:$0]  %s0, 256, %s28, [#allocation3], 64, 64, 4
    $region5: #{tpu_custom_call.1} parent=1 // pred_fallthru
      _
    // Predicated region
    $region6: #{tpu_custom_call.1} parent=1 // pred_check
      _
    $region7: #{tpu_custom_call.1} parent=1 // pred_check_branch
      %35 = sbr.rel (0) target = $region9
    $region8: #{tpu_custom_call.1} parent=1 // pred_region
      %s37 = ssub.s32 512, 512
      %38 = vsyncadd [#allocation6], %s37
      %s39 = sshll.u32 [#allocation5], 4
      %s40 = int_to_ptr.vmem [resolvable:$true] %s39
      %45 = dma.hbm_to_vmem [thread:$0]  %s1, 512, %s40, [#allocation6], 128, 128, 8
    $region9: #{tpu_custom_call.1} parent=1 // pred_fallthru
      _
    // Predicated region
    $region10: #{tpu_custom_call.1} parent=1 // pred_check
      _
    $region11: #{tpu_custom_call.1} parent=1 // pred_check_branch
      %47 = sbr.rel (0) target = $region13
    $region12: #{tpu_custom_call.1} parent=1 // pred_region
      %s49 = ssub.s32 256, 256
      %50 = vsyncadd [#allocation6], %s49
      %s51 = sshll.u32 [#allocation7], 4
      %s52 = int_to_ptr.vmem [resolvable:$true] %s51
      %57 = dma.hbm_to_vmem [thread:$0]  %s2, 256, %s52, [#allocation6], 128, 128, 8
    $region13: #{tpu_custom_call.1} parent=1 // pred_fallthru
      _
    // Predicated region
    $region14: #{tpu_custom_call.1} parent=1 // pred_check
      _
    $region15: #{tpu_custom_call.1} parent=1 // pred_check_branch
      %59 = sbr.rel (0) target = $region17
    $region16: #{tpu_custom_call.1} parent=1 // pred_region
      %s61 = ssub.s32 16, 16
      %62 = vsyncadd [#allocation9], %s61
      %s64 = sshll.u32 [#allocation8], 4
      %s65 = int_to_ptr.vmem [resolvable:$true] %s64
      %67 = dma.hbm_to_vmem [thread:$0]  %s3, 16, %s65, [#allocation9]
    $region17: #{tpu_custom_call.1} parent=1 // pred_fallthru
      _
    // Predicated region
    $region18: #{tpu_custom_call.1} parent=1 // pred_check
      _
    $region19: #{tpu_custom_call.1} parent=1 // pred_check_branch
      %69 = sbr.rel (0) target = $region21
    $region20: #{tpu_custom_call.1} parent=1 // pred_region
      %s71 = ssub.s32 384, 384
      %72 = vsyncadd [#allocation9], %s71
      %s73 = sshll.u32 [#allocation10], 4
      %s74 = int_to_ptr.vmem [resolvable:$true] %s73
      %79 = dma.hbm_to_vmem [thread:$0]  %s4, 384, %s74, [#allocation9], 128, 128, 8
    $region21: #{tpu_custom_call.1} parent=1 // pred_fallthru
      _
    // Predicated region
    $region22: #{tpu_custom_call.1} parent=1 // pred_check
      _
    $region23: #{tpu_custom_call.1} parent=1 // pred_check_branch
      %81 = sbr.rel (0) target = $region25
    $region24: #{tpu_custom_call.1} parent=1 // pred_region
      %s83 = ssub.s32 16, 16
      %84 = vsyncadd [#allocation12], %s83
      %s86 = sshll.u32 [#allocation11], 4
      %s87 = int_to_ptr.vmem [resolvable:$true] %s86
      %89 = dma.hbm_to_vmem [thread:$0]  %s5, 16, %s87, [#allocation12]
    $region25: #{tpu_custom_call.1} parent=1 // pred_fallthru
      _
    // Predicated region
    $region26: #{tpu_custom_call.1} parent=1 // pred_check
      _
    $region27: #{tpu_custom_call.1} parent=1 // pred_check_branch
      %91 = sbr.rel (0) target = $region29
    $region28: #{tpu_custom_call.1} parent=1 // pred_region
      %s93 = ssub.s32 128, 128
      %94 = vsyncadd [#allocation12], %s93
      %s96 = sshll.u32 [#allocation13], 4
      %s97 = int_to_ptr.vmem [resolvable:$true] %s96
      %99 = dma.hbm_to_vmem [thread:$0]  %s6, 128, %s97, [#allocation12]
    $region29: #{tpu_custom_call.1} parent=1 // pred_fallthru
      _
    // Predicated region
    $region30: #{tpu_custom_call.1} parent=1 // pred_check
      _
    $region31: #{tpu_custom_call.1} parent=1 // pred_check_branch
      %101 = sbr.rel (0) target = $region33
    $region32: #{tpu_custom_call.1} parent=1 // pred_region
      %s103 = ssub.s32 128, 128
      %104 = vsyncadd [#allocation15], %s103
      %s106 = sshll.u32 [#allocation14], 4
      %s107 = int_to_ptr.vmem [resolvable:$true] %s106
      %109 = dma.hbm_to_vmem [thread:$0]  %s7, 128, %s107, [#allocation15]
    $region33: #{tpu_custom_call.1} parent=1 // pred_fallthru
      _
    // Predicated region
    $region34: #{tpu_custom_call.1} parent=1 // pred_check
      _
    $region35: #{tpu_custom_call.1} parent=1 // pred_check_branch
      %111 = sbr.rel (0) target = $region37
    $region36: #{tpu_custom_call.1} parent=1 // pred_region
      %112 = dma.done [#allocation3], 256
    $region37: #{tpu_custom_call.1} parent=1 // pred_fallthru
      _
    // Predicated region
    $region38: #{tpu_custom_call.1} parent=1 // pred_check
      _
    $region39: #{tpu_custom_call.1} parent=1 // pred_check_branch
      %114 = sbr.rel (0) target = $region41
    $region40: #{tpu_custom_call.1} parent=1 // pred_region
      %115 = dma.done [#allocation6], 512
    $region41: #{tpu_custom_call.1} parent=1 // pred_fallthru
      _
    // Predicated region
    $region42: #{tpu_custom_call.1} parent=1 // pred_check
      _
    $region43: #{tpu_custom_call.1} parent=1 // pred_check_branch
      %117 = sbr.rel (0) target = $region45
    $region44: #{tpu_custom_call.1} parent=1 // pred_region
      %118 = dma.done [#allocation6], 256
    $region45: #{tpu_custom_call.1} parent=1 // pred_fallthru
      _
    // Predicated region
    $region46: #{tpu_custom_call.1} parent=1 // pred_check
      _
    $region47: #{tpu_custom_call.1} parent=1 // pred_check_branch
      %120 = sbr.rel (0) target = $region49
    $region48: #{tpu_custom_call.1} parent=1 // pred_region
      %121 = dma.done [#allocation9], 16
    $region49: #{tpu_custom_call.1} parent=1 // pred_fallthru
      _
    // Predicated region
    $region50: #{tpu_custom_call.1} parent=1 // pred_check
      _
    $region51: #{tpu_custom_call.1} parent=1 // pred_check_branch
      %123 = sbr.rel (0) target = $region53
    $region52: #{tpu_custom_call.1} parent=1 // pred_region
      %124 = dma.done [#allocation9], 384
    $region53: #{tpu_custom_call.1} parent=1 // pred_fallthru
      _
    // Predicated region
    $region54: #{tpu_custom_call.1} parent=1 // pred_check
      _
    $region55: #{tpu_custom_call.1} parent=1 // pred_check_branch
      %126 = sbr.rel (0) target = $region57
    $region56: #{tpu_custom_call.1} parent=1 // pred_region
      %127 = dma.done [#allocation12], 16
    $region57: #{tpu_custom_call.1} parent=1 // pred_fallthru
      _
    // Predicated region
    $region58: #{tpu_custom_call.1} parent=1 // pred_check
      _
    $region59: #{tpu_custom_call.1} parent=1 // pred_check_branch
      %129 = sbr.rel (0) target = $region61
    $region60: #{tpu_custom_call.1} parent=1 // pred_region
      %130 = dma.done [#allocation12], 128
    $region61: #{tpu_custom_call.1} parent=1 // pred_fallthru
      _
    // Predicated region
    $region62: #{tpu_custom_call.1} parent=1 // pred_check
      _
    $region63: #{tpu_custom_call.1} parent=1 // pred_check_branch
      %132 = sbr.rel (0) target = $region65
    $region64: #{tpu_custom_call.1} parent=1 // pred_region
      %133 = dma.done [#allocation15], 128
    $region65: #{tpu_custom_call.1} parent=1 // pred_fallthru
      _
    %v135 = vld [vmem:[#allocation5] sm:$0xff]
    %v136 = vld [vmem:[#allocation5 + $0x8] sm:$0xff]
    %v137 = vld [vmem:[#allocation5 + $0x10] sm:$0xff]
    %v138 = vld [vmem:[#allocation5 + $0x18] sm:$0xff]
    %v139 = vld [vmem:[#allocation7] sm:$0xff]
    %v140 = vld [vmem:[#allocation7 + $0x8] sm:$0x1]
    %v141 = vld [vmem:[#allocation8] sm:$0x1]
    %v142 = vpack.c.bf16 %v136, %v135
    %v143 = vpack.c.bf16 %v138, %v137
    %v144 = vld [vmem:[#allocation2] sm:$0xf]
    %v145 = vld [vmem:[#allocation2 + $0x4] sm:$0xf]
    %v148 = vunpack.c.l.b16 %v144
    %v149 = vunpack.c.l.b16 %v145
    %v150 = vpack.c.b16 %v149, %v148
    %vm151 = vcmask 130048
    %v153 = vsel %vm151, %v150, 0
    %155 = vmatprep.subr.bf16.mxu0 0
    %156 = vmatpush1.bf16.msra.mxu0 %v142
    %157 = vmatprep.subr.bf16.mxu0 0
    %158 = vmatpush1.bf16.msra.mxu0 0
    %159 = vmatprep.subr.bf16.mxu0 0
    %160 = vmatpush1.bf16.msra.mxu0 0
    %161 = vmatprep.subr.bf16.mxu0 0
    %162 = vmatpush1.bf16.msra.mxu0 0
    %163 = vmatprep.subr.bf16.mxu0 0
    %164 = vmatpush1.bf16.msra.mxu0 0
    %165 = vmatprep.subr.bf16.mxu0 0
    %166 = vmatpush1.bf16.msra.mxu0 0
    %167 = vmatprep.subr.bf16.mxu0 0
    %168 = vmatpush1.bf16.msra.mxu0 0
    %169 = vmatprep.subr.bf16.mxu0 0
    %170 = vmatpush1.bf16.msra.mxu0 0
    %171 = vmatprep.subr.bf16.mxu0 0
    %172 = vmatpush1.bf16.msra.mxu0 0
    %173 = vmatprep.subr.bf16.mxu0 0
    %174 = vmatpush1.bf16.msra.mxu0 0
    %175 = vmatprep.subr.bf16.mxu0 0
    %176 = vmatpush1.bf16.msra.mxu0 0
    %177 = vmatprep.subr.bf16.mxu0 0
    %178 = vmatpush1.bf16.msra.mxu0 0
    %179 = vmatprep.subr.bf16.mxu0 0
    %180 = vmatpush1.bf16.msra.mxu0 0
    %181 = vmatprep.subr.bf16.mxu0 0
    %182 = vmatpush1.bf16.msra.mxu0 0
    %183 = vmatprep.subr.bf16.mxu0 0
    %184 = vmatpush1.bf16.msra.mxu0 0
    %185 = vmatprep.subr.bf16.mxu0 0
    %186 = vmatpush1.bf16.msra.mxu0 0
    %187 = vmatprep.mubr.bf16.mxu0 0
    %188 = vmatmul.mubr.bf16.gmra.mrb[0].mxu0 %v153
    %v189 = vpop.f32.mrb[0].mxu0
    %v190 = vadd.f32 0.0, %v189
    %v191 = vpop.f32.mrb[0].mxu0
    %v192 = vpop.f32.mrb[0].mxu0
    %v193 = vadd.f32 0.0, %v192
    %v194 = vpop.f32.mrb[0].mxu0
    %195 = vdwg.mxu0
    %s196 = scalar_lea.vmem [#allocation2], 8
    %v197 = vld [vmem:[%s196] sm:$0xf]
    %v198 = vld [vmem:[%s196 + $0x4] sm:$0xf]
    %v201 = vunpack.c.l.b16 %v197
    %v202 = vunpack.c.l.b16 %v198
    %v203 = vpack.c.b16 %v202, %v201
    %v205 = vsel %vm151, %v203, 0
    %207 = vmatprep.subr.bf16.mxu0 0
    %208 = vmatpush1.bf16.msra.mxu0 %v143
    %209 = vmatprep.subr.bf16.mxu0 0
    %210 = vmatpush1.bf16.msra.mxu0 0
    %211 = vmatprep.subr.bf16.mxu0 0
    %212 = vmatpush1.bf16.msra.mxu0 0
    %213 = vmatprep.subr.bf16.mxu0 0
    %214 = vmatpush1.bf16.msra.mxu0 0
    %215 = vmatprep.subr.bf16.mxu0 0
    %216 = vmatpush1.bf16.msra.mxu0 0
    %217 = vmatprep.subr.bf16.mxu0 0
    %218 = vmatpush1.bf16.msra.mxu0 0
    %219 = vmatprep.subr.bf16.mxu0 0
    %220 = vmatpush1.bf16.msra.mxu0 0
    %221 = vmatprep.subr.bf16.mxu0 0
    %222 = vmatpush1.bf16.msra.mxu0 0
    %223 = vmatprep.subr.bf16.mxu0 0
    %224 = vmatpush1.bf16.msra.mxu0 0
    %225 = vmatprep.subr.bf16.mxu0 0
    %226 = vmatpush1.bf16.msra.mxu0 0
    %227 = vmatprep.subr.bf16.mxu0 0
    %228 = vmatpush1.bf16.msra.mxu0 0
    %229 = vmatprep.subr.bf16.mxu0 0
    %230 = vmatpush1.bf16.msra.mxu0 0
    %231 = vmatprep.subr.bf16.mxu0 0
    %232 = vmatpush1.bf16.msra.mxu0 0
    %233 = vmatprep.subr.bf16.mxu0 0
    %234 = vmatpush1.bf16.msra.mxu0 0
    %235 = vmatprep.subr.bf16.mxu0 0
    %236 = vmatpush1.bf16.msra.mxu0 0
    %237 = vmatprep.subr.bf16.mxu0 0
    %238 = vmatpush1.bf16.msra.mxu0 0
    %239 = vmatprep.mubr.bf16.mxu0 0
    %240 = vmatmul.mubr.bf16.gmra.mrb[0].mxu0 %v205
    %v241 = vpop.f32.mrb[0].mxu0
    %v242 = vadd.f32 0.0, %v241
    %v243 = vpop.f32.mrb[0].mxu0
    %v244 = vpop.f32.mrb[0].mxu0
    %v245 = vadd.f32 0.0, %v244
    %v246 = vpop.f32.mrb[0].mxu0
    %247 = vdwg.mxu0
    %v248 = vpack.c.bf16 %v193, %v190
    %v249 = vpack.c.bf16 %v245, %v242
    %250 = vmatprep.subr.bf16.mxu0 0
    %251 = vmatpush1.bf16.msra.mxu0 %v248
    %252 = vmatprep.subr.bf16.mxu0 0
    %253 = vmatpush1.bf16.msra.mxu0 0
    %254 = vmatprep.subr.bf16.mxu0 0
    %255 = vmatpush1.bf16.msra.mxu0 0
    %256 = vmatprep.subr.bf16.mxu0 0
    %257 = vmatpush1.bf16.msra.mxu0 0
    %258 = vmatprep.subr.bf16.mxu0 0
    %259 = vmatpush1.bf16.msra.mxu0 0
    %260 = vmatprep.subr.bf16.mxu0 0
    %261 = vmatpush1.bf16.msra.mxu0 0
    %262 = vmatprep.subr.bf16.mxu0 0
    %263 = vmatpush1.bf16.msra.mxu0 0
    %264 = vmatprep.subr.bf16.mxu0 0
    %265 = vmatpush1.bf16.msra.mxu0 0
    %266 = vmatprep.subr.bf16.mxu0 0
    %267 = vmatpush1.bf16.msra.mxu0 0
    %268 = vmatprep.subr.bf16.mxu0 0
    %269 = vmatpush1.bf16.msra.mxu0 0
    %270 = vmatprep.subr.bf16.mxu0 0
    %271 = vmatpush1.bf16.msra.mxu0 0
    %272 = vmatprep.subr.bf16.mxu0 0
    %273 = vmatpush1.bf16.msra.mxu0 0
    %274 = vmatprep.subr.bf16.mxu0 0
    %275 = vmatpush1.bf16.msra.mxu0 0
    %276 = vmatprep.subr.bf16.mxu0 0
    %277 = vmatpush1.bf16.msra.mxu0 0
    %278 = vmatprep.subr.bf16.mxu0 0
    %279 = vmatpush1.bf16.msra.mxu0 0
    %280 = vmatprep.subr.bf16.mxu0 0
    %281 = vmatpush1.bf16.msra.mxu0 0
    %282 = vmatprep.mubr.bf16.mxu0 0
    %283 = vmatmul.mubr.bf16.gmra.mrb[0].mxu0 %v153
    %v284 = vpop.f32.mrb[0].mxu0
    %v285 = vadd.f32 0.0, %v284
    %v286 = vpop.f32.mrb[0].mxu0
    %v287 = vpop.f32.mrb[0].mxu0
    %v288 = vadd.f32 0.0, %v287
    %v289 = vpop.f32.mrb[0].mxu0
    %290 = vdwg.mxu0
    %291 = vmatprep.subr.bf16.mxu0 0
    %292 = vmatpush1.bf16.msra.mxu0 %v249
    %293 = vmatprep.subr.bf16.mxu0 0
    %294 = vmatpush1.bf16.msra.mxu0 0
    %295 = vmatprep.subr.bf16.mxu0 0
    %296 = vmatpush1.bf16.msra.mxu0 0
    %297 = vmatprep.subr.bf16.mxu0 0
    %298 = vmatpush1.bf16.msra.mxu0 0
    %299 = vmatprep.subr.bf16.mxu0 0
    %300 = vmatpush1.bf16.msra.mxu0 0
    %301 = vmatprep.subr.bf16.mxu0 0
    %302 = vmatpush1.bf16.msra.mxu0 0
    %303 = vmatprep.subr.bf16.mxu0 0
    %304 = vmatpush1.bf16.msra.mxu0 0
    %305 = vmatprep.subr.bf16.mxu0 0
    %306 = vmatpush1.bf16.msra.mxu0 0
    %307 = vmatprep.subr.bf16.mxu0 0
    %308 = vmatpush1.bf16.msra.mxu0 0
    %309 = vmatprep.subr.bf16.mxu0 0
    %310 = vmatpush1.bf16.msra.mxu0 0
    %311 = vmatprep.subr.bf16.mxu0 0
    %312 = vmatpush1.bf16.msra.mxu0 0
    %313 = vmatprep.subr.bf16.mxu0 0
    %314 = vmatpush1.bf16.msra.mxu0 0
    %315 = vmatprep.subr.bf16.mxu0 0
    %316 = vmatpush1.bf16.msra.mxu0 0
    %317 = vmatprep.subr.bf16.mxu0 0
    %318 = vmatpush1.bf16.msra.mxu0 0
    %319 = vmatprep.subr.bf16.mxu0 0
    %320 = vmatpush1.bf16.msra.mxu0 0
    %321 = vmatprep.subr.bf16.mxu0 0
    %322 = vmatpush1.bf16.msra.mxu0 0
    %323 = vmatprep.mubr.bf16.mxu0 0
    %324 = vmatmul.mubr.bf16.gmra.mrb[0].mxu0 %v205
    %v325 = vpop.f32.mrb[0].mxu0
    %v326 = vadd.f32 0.0, %v325
    %v327 = vpop.f32.mrb[0].mxu0
    %v328 = vpop.f32.mrb[0].mxu0
    %v329 = vadd.f32 0.0, %v328
    %v330 = vpop.f32.mrb[0].mxu0
    %331 = vdwg.mxu0
    %v332 = vmul.f32 %v285, 2.0
    %v333 = vmul.f32 %v288, 2.0
    %v334 = vmul.f32 %v326, 2.0
    %v335 = vmul.f32 %v329, 2.0
    %v336 = vsub.f32 %v332, %v135
    %v337 = vsub.f32 %v333, %v136
    %v338 = vsub.f32 %v334, %v137
    %v339 = vsub.f32 %v335, %v138
    %344 = vrot.lane.b32.xlu0 %v190, 3
    %v345 = vpop.permute.xlu0 %344
    %346 = vrot.lane.b32.xlu0 %v193, 3
    %v347 = vpop.permute.xlu0 %346
    %348 = vrot.lane.b32.xlu0 %v242, 3
    %v349 = vpop.permute.xlu0 %348
    %350 = vrot.lane.b32.xlu0 %v245, 3
    %v351 = vpop.permute.xlu0 %350
    %360 = vrot.lane.b32.xlu0 %v336, 6
    %v361 = vpop.permute.xlu0 %360
    %362 = vrot.lane.b32.xlu0 %v337, 6
    %v363 = vpop.permute.xlu0 %362
    %364 = vrot.lane.b32.xlu0 %v338, 6
    %v365 = vpop.permute.xlu0 %364
    %366 = vrot.lane.b32.xlu0 %v339, 6
    %v367 = vpop.permute.xlu0 %366
    %vm372 = vcmask 23552
    %v373 = vsel %vm372, %v135, %v345
    %v374 = vsel %vm372, %v136, %v347
    %v375 = vsel %vm372, %v137, %v349
    %v376 = vsel %vm372, %v138, %v351
    %vm377 = vcmask 48128
    %v378 = vsel %vm377, %v373, %v361
    %v379 = vsel %vm377, %v374, %v363
    %v380 = vsel %vm377, %v375, %v365
    %v381 = vsel %vm377, %v376, %v367
    %v383 = vlaneseq
    %v384 = vshrl.u32 %v383, 7
    %v385 = vsub.s32 0, %v384
    %v386 = vrot.slane %v141, %v385
    %vm388 = vcmask 72704
    %v390 = vsel %vm388, %v378, 0
    %v393 = vsel %vm388, %v379, 0
    %v396 = vsel %vm388, %v380, 0
    %v399 = vsel %vm388, %v381, 0
    %vm401 = vcmask 1040384
    %v403 = vsel %vm401, %v140, 0
    %405 = vmatprep.subr.mxu0 0.0
    %406 = vmatpush1.msra.mxu0 %v139
    %407 = vmatprep.subr.mxu0 0.0
    %408 = vmatpush1.msra.mxu0 %v403
    %409 = vmatprep.subr.mxu0 0.0
    %410 = vmatpush1.msra.mxu0 0.0
    %411 = vmatprep.subr.mxu0 0.0
    %412 = vmatpush1.msra.mxu0 0.0
    %413 = vmatprep.subr.mxu0 0.0
    %414 = vmatpush1.msra.mxu0 0.0
    %415 = vmatprep.subr.mxu0 0.0
    %416 = vmatpush1.msra.mxu0 0.0
    %417 = vmatprep.subr.mxu0 0.0
    %418 = vmatpush1.msra.mxu0 0.0
    %419 = vmatprep.subr.mxu0 0.0
    %420 = vmatpush1.msra.mxu0 0.0
    %421 = vmatprep.subr.mxu0 0.0
    %422 = vmatpush1.msra.mxu0 0.0
    %423 = vmatprep.subr.mxu0 0.0
    %424 = vmatpush1.msra.mxu0 0.0
    %425 = vmatprep.subr.mxu0 0.0
    %426 = vmatpush1.msra.mxu0 0.0
    %427 = vmatprep.subr.mxu0 0.0
    %428 = vmatpush1.msra.mxu0 0.0
    %429 = vmatprep.subr.mxu0 0.0
    %430 = vmatpush1.msra.mxu0 0.0
    %431 = vmatprep.subr.mxu0 0.0
    %432 = vmatpush1.msra.mxu0 0.0
    %433 = vmatprep.subr.mxu0 0.0
    %434 = vmatpush1.msra.mxu0 0.0
    %435 = vmatprep.subr.mxu0 0.0
    %436 = vmatpush1.msra.mxu0 0.0
    %437 = vmatprep.subr.mxu0 0.0
    %438 = vmatpush1.msra.mxu0 0.0
    %439 = vmatprep.subr.mxu0 0.0
    %440 = vmatpush1.msra.mxu0 0.0
    %441 = vmatprep.subr.mxu0 0.0
    %442 = vmatpush1.msra.mxu0 0.0
    %443 = vmatprep.subr.mxu0 0.0
    %444 = vmatpush1.msra.mxu0 0.0
    %445 = vmatprep.subr.mxu0 0.0
    %446 = vmatpush1.msra.mxu0 0.0
    %447 = vmatprep.subr.mxu0 0.0
    %448 = vmatpush1.msra.mxu0 0.0
    %449 = vmatprep.subr.mxu0 0.0
    %450 = vmatpush1.msra.mxu0 0.0
    %451 = vmatprep.subr.mxu0 0.0
    %452 = vmatpush1.msra.mxu0 0.0
    %453 = vmatprep.subr.mxu0 0.0
    %454 = vmatpush1.msra.mxu0 0.0
    %455 = vmatprep.subr.mxu0 0.0
    %456 = vmatpush1.msra.mxu0 0.0
    %457 = vmatprep.subr.mxu0 0.0
    %458 = vmatpush1.msra.mxu0 0.0
    %459 = vmatprep.subr.mxu0 0.0
    %460 = vmatpush1.msra.mxu0 0.0
    %461 = vmatprep.subr.mxu0 0.0
    %462 = vmatpush1.msra.mxu0 0.0
    %463 = vmatprep.subr.mxu0 0.0
    %464 = vmatpush1.msra.mxu0 0.0
    %465 = vmatprep.subr.mxu0 0.0
    %466 = vmatpush1.msra.mxu0 0.0
    %467 = vmatprep.subr.mxu0 0.0
    %468 = vmatpush1.msra.mxu0 0.0
    %469 = vmatprep.mubr.f32.mxu0 0.0
    %470 = vmatmul.mubr.f32.gmra.mrb[0].mxu0 %v390
    %v471 = vpop.f32.mrb[0].mxu0
    %v472 = vadd.f32 %v386, %v471
    %v473 = vpop.f32.mrb[0].mxu0
    %474 = vmatprep.mubr.f32.mxu0 0.0
    %475 = vmatmul.mubr.f32.gmra.mrb[0].mxu0 %v393
    %v476 = vpop.f32.mrb[0].mxu0
    %v477 = vadd.f32 %v386, %v476
    %v478 = vpop.f32.mrb[0].mxu0
    %479 = vmatprep.mubr.f32.mxu0 0.0
    %480 = vmatmul.mubr.f32.gmra.mrb[0].mxu0 %v396
    %v481 = vpop.f32.mrb[0].mxu0
    %v482 = vadd.f32 %v386, %v481
    %v483 = vpop.f32.mrb[0].mxu0
    %484 = vmatprep.mubr.f32.mxu0 0.0
    %485 = vmatmul.mubr.f32.gmra.mrb[0].mxu0 %v399
    %v486 = vpop.f32.mrb[0].mxu0
    %v487 = vadd.f32 %v386, %v486
    %v488 = vpop.f32.mrb[0].mxu0
    %489 = vdwg.mxu0
    %v490 = vtanh.pop %v472
    %v491 = vtanh.pop %v477
    %v492 = vtanh.pop %v482
    %v493 = vtanh.pop %v487
    %vm494 = vcmask 64512
    %v495 = vsel %vm494, %v490, 0.0
    %v496 = vsel %vm494, %v491, 0.0
    %v497 = vadd.f32 %v495, %v496
    %v498 = vsel %vm494, %v492, 0.0
    %v499 = vadd.f32 %v497, %v498
    %v500 = vsel %vm494, %v493, 0.0
    %v501 = vadd.f32 %v499, %v500
    %v502 = vrot.slane %v501, 4
    %v503 = vadd.f32 %v501, %v502
    %v504 = vrot.slane %v503, 2
    %v505 = vadd.f32 %v503, %v504
    %v506 = vrot.slane %v505, 1
    %v507 = vadd.f32 %v505, %v506
    %v508 = vrcp.pop 32.0
    %v509 = vmul.f32 %v507, %v508
    %v510 = vsub.f32 %v490, %v509
    %v511 = vsub.f32 %v491, %v509
    %v512 = vsub.f32 %v492, %v509
    %v513 = vsub.f32 %v493, %v509
    %v514 = vmul.f32 %v510, %v510
    %v515 = vmul.f32 %v511, %v511
    %v516 = vmul.f32 %v512, %v512
    %v517 = vmul.f32 %v513, %v513
    %v518 = vsel %vm494, %v514, 0.0
    %v519 = vsel %vm494, %v515, 0.0
    %v520 = vadd.f32 %v518, %v519
    %v521 = vsel %vm494, %v516, 0.0
    %v522 = vadd.f32 %v520, %v521
    %v523 = vsel %vm494, %v517, 0.0
    %v524 = vadd.f32 %v522, %v523
    %v525 = vrot.slane %v524, 4
    %v526 = vadd.f32 %v524, %v525
    %v527 = vrot.slane %v526, 2
    %v528 = vadd.f32 %v526, %v527
    %v529 = vrot.slane %v528, 1
    %v530 = vadd.f32 %v528, %v529
    %v531 = vmul.f32 %v530, %v508
    %v532 = vadd.f32 %v531, 1e-05
    %v533 = vrsqrt.pop %v532
    %v534 = vmul.f32 %v510, %v533
    %v535 = vmul.f32 %v511, %v533
    %v536 = vmul.f32 %v512, %v533
    %v537 = vmul.f32 %v513, %v533
    %v538 = vld [vmem:[#allocation10] sm:$0xff]
    %v539 = vld [vmem:[#allocation10 + $0x8] sm:$0xff]
    %v540 = vld [vmem:[#allocation10 + $0x10] sm:$0xff]
    %v541 = vld [vmem:[#allocation11] sm:$0x1]
    %v542 = vpack.c.bf16 %v535, %v534
    %v543 = vpack.c.bf16 %v537, %v536
    %544 = vmatprep.subr.bf16.mxu0 0
    %545 = vmatpush1.bf16.msra.mxu0 %v542
    %546 = vmatprep.subr.bf16.mxu0 0
    %547 = vmatpush1.bf16.msra.mxu0 0
    %548 = vmatprep.subr.bf16.mxu0 0
    %549 = vmatpush1.bf16.msra.mxu0 0
    %550 = vmatprep.subr.bf16.mxu0 0
    %551 = vmatpush1.bf16.msra.mxu0 0
    %552 = vmatprep.subr.bf16.mxu0 0
    %553 = vmatpush1.bf16.msra.mxu0 0
    %554 = vmatprep.subr.bf16.mxu0 0
    %555 = vmatpush1.bf16.msra.mxu0 0
    %556 = vmatprep.subr.bf16.mxu0 0
    %557 = vmatpush1.bf16.msra.mxu0 0
    %558 = vmatprep.subr.bf16.mxu0 0
    %559 = vmatpush1.bf16.msra.mxu0 0
    %560 = vmatprep.subr.bf16.mxu0 0
    %561 = vmatpush1.bf16.msra.mxu0 0
    %562 = vmatprep.subr.bf16.mxu0 0
    %563 = vmatpush1.bf16.msra.mxu0 0
    %564 = vmatprep.subr.bf16.mxu0 0
    %565 = vmatpush1.bf16.msra.mxu0 0
    %566 = vmatprep.subr.bf16.mxu0 0
    %567 = vmatpush1.bf16.msra.mxu0 0
    %568 = vmatprep.subr.bf16.mxu0 0
    %569 = vmatpush1.bf16.msra.mxu0 0
    %570 = vmatprep.subr.bf16.mxu0 0
    %571 = vmatpush1.bf16.msra.mxu0 0
    %572 = vmatprep.subr.bf16.mxu0 0
    %573 = vmatpush1.bf16.msra.mxu0 0
    %574 = vmatprep.subr.bf16.mxu0 0
    %575 = vmatpush1.bf16.msra.mxu0 0
    %576 = vmatprep.mubr.bf16.mxu0 0
    %577 = vmatmul.mubr.bf16.gmra.mrb[0].mxu0 %v153
    %v578 = vpop.f32.mrb[0].mxu0
    %v579 = vadd.f32 0.0, %v578
    %v580 = vpop.f32.mrb[0].mxu0
    %v581 = vpop.f32.mrb[0].mxu0
    %v582 = vadd.f32 0.0, %v581
    %v583 = vpop.f32.mrb[0].mxu0
    %584 = vdwg.mxu0
    %585 = vmatprep.subr.bf16.mxu0 0
    %586 = vmatpush1.bf16.msra.mxu0 %v543
    %587 = vmatprep.subr.bf16.mxu0 0
    %588 = vmatpush1.bf16.msra.mxu0 0
    %589 = vmatprep.subr.bf16.mxu0 0
    %590 = vmatpush1.bf16.msra.mxu0 0
    %591 = vmatprep.subr.bf16.mxu0 0
    %592 = vmatpush1.bf16.msra.mxu0 0
    %593 = vmatprep.subr.bf16.mxu0 0
    %594 = vmatpush1.bf16.msra.mxu0 0
    %595 = vmatprep.subr.bf16.mxu0 0
    %596 = vmatpush1.bf16.msra.mxu0 0
    %597 = vmatprep.subr.bf16.mxu0 0
    %598 = vmatpush1.bf16.msra.mxu0 0
    %599 = vmatprep.subr.bf16.mxu0 0
    %600 = vmatpush1.bf16.msra.mxu0 0
    %601 = vmatprep.subr.bf16.mxu0 0
    %602 = vmatpush1.bf16.msra.mxu0 0
    %603 = vmatprep.subr.bf16.mxu0 0
    %604 = vmatpush1.bf16.msra.mxu0 0
    %605 = vmatprep.subr.bf16.mxu0 0
    %606 = vmatpush1.bf16.msra.mxu0 0
    %607 = vmatprep.subr.bf16.mxu0 0
    %608 = vmatpush1.bf16.msra.mxu0 0
    %609 = vmatprep.subr.bf16.mxu0 0
    %610 = vmatpush1.bf16.msra.mxu0 0
    %611 = vmatprep.subr.bf16.mxu0 0
    %612 = vmatpush1.bf16.msra.mxu0 0
    %613 = vmatprep.subr.bf16.mxu0 0
    %614 = vmatpush1.bf16.msra.mxu0 0
    %615 = vmatprep.subr.bf16.mxu0 0
    %616 = vmatpush1.bf16.msra.mxu0 0
    %617 = vmatprep.mubr.bf16.mxu0 0
    %618 = vmatmul.mubr.bf16.gmra.mrb[0].mxu0 %v205
    %v619 = vpop.f32.mrb[0].mxu0
    %v620 = vadd.f32 0.0, %v619
    %v621 = vpop.f32.mrb[0].mxu0
    %v622 = vpop.f32.mrb[0].mxu0
    %v623 = vadd.f32 0.0, %v622
    %v624 = vpop.f32.mrb[0].mxu0
    %625 = vdwg.mxu0
    %v626 = vpack.c.bf16 %v582, %v579
    %v627 = vpack.c.bf16 %v623, %v620
    %628 = vmatprep.subr.bf16.mxu0 0
    %629 = vmatpush1.bf16.msra.mxu0 %v626
    %630 = vmatprep.subr.bf16.mxu0 0
    %631 = vmatpush1.bf16.msra.mxu0 0
    %632 = vmatprep.subr.bf16.mxu0 0
    %633 = vmatpush1.bf16.msra.mxu0 0
    %634 = vmatprep.subr.bf16.mxu0 0
    %635 = vmatpush1.bf16.msra.mxu0 0
    %636 = vmatprep.subr.bf16.mxu0 0
    %637 = vmatpush1.bf16.msra.mxu0 0
    %638 = vmatprep.subr.bf16.mxu0 0
    %639 = vmatpush1.bf16.msra.mxu0 0
    %640 = vmatprep.subr.bf16.mxu0 0
    %641 = vmatpush1.bf16.msra.mxu0 0
    %642 = vmatprep.subr.bf16.mxu0 0
    %643 = vmatpush1.bf16.msra.mxu0 0
    %644 = vmatprep.subr.bf16.mxu0 0
    %645 = vmatpush1.bf16.msra.mxu0 0
    %646 = vmatprep.subr.bf16.mxu0 0
    %647 = vmatpush1.bf16.msra.mxu0 0
    %648 = vmatprep.subr.bf16.mxu0 0
    %649 = vmatpush1.bf16.msra.mxu0 0
    %650 = vmatprep.subr.bf16.mxu0 0
    %651 = vmatpush1.bf16.msra.mxu0 0
    %652 = vmatprep.subr.bf16.mxu0 0
    %653 = vmatpush1.bf16.msra.mxu0 0
    %654 = vmatprep.subr.bf16.mxu0 0
    %655 = vmatpush1.bf16.msra.mxu0 0
    %656 = vmatprep.subr.bf16.mxu0 0
    %657 = vmatpush1.bf16.msra.mxu0 0
    %658 = vmatprep.subr.bf16.mxu0 0
    %659 = vmatpush1.bf16.msra.mxu0 0
    %660 = vmatprep.mubr.bf16.mxu0 0
    %661 = vmatmul.mubr.bf16.gmra.mrb[0].mxu0 %v153
    %v662 = vpop.f32.mrb[0].mxu0
    %v663 = vadd.f32 0.0, %v662
    %v664 = vpop.f32.mrb[0].mxu0
    %v665 = vpop.f32.mrb[0].mxu0
    %v666 = vadd.f32 0.0, %v665
    %v667 = vpop.f32.mrb[0].mxu0
    %668 = vdwg.mxu0
    %669 = vmatprep.subr.bf16.mxu0 0
    %670 = vmatpush1.bf16.msra.mxu0 %v627
    %671 = vmatprep.subr.bf16.mxu0 0
    %672 = vmatpush1.bf16.msra.mxu0 0
    %673 = vmatprep.subr.bf16.mxu0 0
    %674 = vmatpush1.bf16.msra.mxu0 0
    %675 = vmatprep.subr.bf16.mxu0 0
    %676 = vmatpush1.bf16.msra.mxu0 0
    %677 = vmatprep.subr.bf16.mxu0 0
    %678 = vmatpush1.bf16.msra.mxu0 0
    %679 = vmatprep.subr.bf16.mxu0 0
    %680 = vmatpush1.bf16.msra.mxu0 0
    %681 = vmatprep.subr.bf16.mxu0 0
    %682 = vmatpush1.bf16.msra.mxu0 0
    %683 = vmatprep.subr.bf16.mxu0 0
    %684 = vmatpush1.bf16.msra.mxu0 0
    %685 = vmatprep.subr.bf16.mxu0 0
    %686 = vmatpush1.bf16.msra.mxu0 0
    %687 = vmatprep.subr.bf16.mxu0 0
    %688 = vmatpush1.bf16.msra.mxu0 0
    %689 = vmatprep.subr.bf16.mxu0 0
    %690 = vmatpush1.bf16.msra.mxu0 0
    %691 = vmatprep.subr.bf16.mxu0 0
    %692 = vmatpush1.bf16.msra.mxu0 0
    %693 = vmatprep.subr.bf16.mxu0 0
    %694 = vmatpush1.bf16.msra.mxu0 0
    %695 = vmatprep.subr.bf16.mxu0 0
    %696 = vmatpush1.bf16.msra.mxu0 0
    %697 = vmatprep.subr.bf16.mxu0 0
    %698 = vmatpush1.bf16.msra.mxu0 0
    %699 = vmatprep.subr.bf16.mxu0 0
    %700 = vmatpush1.bf16.msra.mxu0 0
    %701 = vmatprep.mubr.bf16.mxu0 0
    %702 = vmatmul.mubr.bf16.gmra.mrb[0].mxu0 %v205
    %v703 = vpop.f32.mrb[0].mxu0
    %v704 = vadd.f32 0.0, %v703
    %v705 = vpop.f32.mrb[0].mxu0
    %v706 = vpop.f32.mrb[0].mxu0
    %v707 = vadd.f32 0.0, %v706
    %v708 = vpop.f32.mrb[0].mxu0
    %709 = vdwg.mxu0
    %v710 = vmul.f32 %v663, 2.0
    %v711 = vmul.f32 %v666, 2.0
    %v712 = vmul.f32 %v704, 2.0
    %v713 = vmul.f32 %v707, 2.0
    %v714 = vsub.f32 %v710, %v534
    %v715 = vsub.f32 %v711, %v535
    %v716 = vsub.f32 %v712, %v536
    %v717 = vsub.f32 %v713, %v537
    %722 = vrot.lane.b32.xlu0 %v579, 8
    %v723 = vpop.permute.xlu0 %722
    %724 = vrot.lane.b32.xlu0 %v582, 8
    %v725 = vpop.permute.xlu0 %724
    %726 = vrot.lane.b32.xlu0 %v620, 8
    %v727 = vpop.permute.xlu0 %726
    %728 = vrot.lane.b32.xlu0 %v623, 8
    %v729 = vpop.permute.xlu0 %728
    %738 = vrot.lane.b32.xlu0 %v714, 16
    %v739 = vpop.permute.xlu0 %738
    %740 = vrot.lane.b32.xlu0 %v715, 16
    %v741 = vpop.permute.xlu0 %740
    %742 = vrot.lane.b32.xlu0 %v716, 16
    %v743 = vpop.permute.xlu0 %742
    %744 = vrot.lane.b32.xlu0 %v717, 16
    %v745 = vpop.permute.xlu0 %744
    %v750 = vsel %vm494, %v534, %v723
    %v751 = vsel %vm494, %v535, %v725
    %v752 = vsel %vm494, %v536, %v727
    %v753 = vsel %vm494, %v537, %v729
    %v754 = vsel %vm151, %v750, %v739
    %v755 = vsel %vm151, %v751, %v741
    %v756 = vsel %vm151, %v752, %v743
    %v757 = vsel %vm151, %v753, %v745
    %v759 = vlaneseq
    %v760 = vshrl.u32 %v759, 7
    %v761 = vsub.s32 0, %v760
    %v762 = vrot.slane %v541, %v761
    %vm764 = vcmask 195584
    %v766 = vsel %vm764, %v754, 0
    %v769 = vsel %vm764, %v755, 0
    %v772 = vsel %vm764, %v756, 0
    %v775 = vsel %vm764, %v757, 0
    %777 = vmatprep.subr.mxu0 0.0
    %778 = vmatpush1.msra.mxu0 %v538
    %779 = vmatprep.subr.mxu0 0.0
    %780 = vmatpush1.msra.mxu0 %v539
    %781 = vmatprep.subr.mxu0 0.0
    %782 = vmatpush1.msra.mxu0 %v540
    %783 = vmatprep.subr.mxu0 0.0
    %784 = vmatpush1.msra.mxu0 0.0
    %785 = vmatprep.subr.mxu0 0.0
    %786 = vmatpush1.msra.mxu0 0.0
    %787 = vmatprep.subr.mxu0 0.0
    %788 = vmatpush1.msra.mxu0 0.0
    %789 = vmatprep.subr.mxu0 0.0
    %790 = vmatpush1.msra.mxu0 0.0
    %791 = vmatprep.subr.mxu0 0.0
    %792 = vmatpush1.msra.mxu0 0.0
    %793 = vmatprep.subr.mxu0 0.0
    %794 = vmatpush1.msra.mxu0 0.0
    %795 = vmatprep.subr.mxu0 0.0
    %796 = vmatpush1.msra.mxu0 0.0
    %797 = vmatprep.subr.mxu0 0.0
    %798 = vmatpush1.msra.mxu0 0.0
    %799 = vmatprep.subr.mxu0 0.0
    %800 = vmatpush1.msra.mxu0 0.0
    %801 = vmatprep.subr.mxu0 0.0
    %802 = vmatpush1.msra.mxu0 0.0
    %803 = vmatprep.subr.mxu0 0.0
    %804 = vmatpush1.msra.mxu0 0.0
    %805 = vmatprep.subr.mxu0 0.0
    %806 = vmatpush1.msra.mxu0 0.0
    %807 = vmatprep.subr.mxu0 0.0
    %808 = vmatpush1.msra.mxu0 0.0
    %809 = vmatprep.subr.mxu0 0.0
    %810 = vmatpush1.msra.mxu0 0.0
    %811 = vmatprep.subr.mxu0 0.0
    %812 = vmatpush1.msra.mxu0 0.0
    %813 = vmatprep.subr.mxu0 0.0
    %814 = vmatpush1.msra.mxu0 0.0
    %815 = vmatprep.subr.mxu0 0.0
    %816 = vmatpush1.msra.mxu0 0.0
    %817 = vmatprep.subr.mxu0 0.0
    %818 = vmatpush1.msra.mxu0 0.0
    %819 = vmatprep.subr.mxu0 0.0
    %820 = vmatpush1.msra.mxu0 0.0
    %821 = vmatprep.subr.mxu0 0.0
    %822 = vmatpush1.msra.mxu0 0.0
    %823 = vmatprep.subr.mxu0 0.0
    %824 = vmatpush1.msra.mxu0 0.0
    %825 = vmatprep.subr.mxu0 0.0
    %826 = vmatpush1.msra.mxu0 0.0
    %827 = vmatprep.subr.mxu0 0.0
    %828 = vmatpush1.msra.mxu0 0.0
    %829 = vmatprep.subr.mxu0 0.0
    %830 = vmatpush1.msra.mxu0 0.0
    %831 = vmatprep.subr.mxu0 0.0
    %832 = vmatpush1.msra.mxu0 0.0
    %833 = vmatprep.subr.mxu0 0.0
    %834 = vmatpush1.msra.mxu0 0.0
    %835 = vmatprep.subr.mxu0 0.0
    %836 = vmatpush1.msra.mxu0 0.0
    %837 = vmatprep.subr.mxu0 0.0
    %838 = vmatpush1.msra.mxu0 0.0
    %839 = vmatprep.subr.mxu0 0.0
    %840 = vmatpush1.msra.mxu0 0.0
    %841 = vmatprep.mubr.f32.mxu0 0.0
    %842 = vmatmul.mubr.f32.gmra.mrb[0].mxu0 %v766
    %v843 = vpop.f32.mrb[0].mxu0
    %v844 = vadd.f32 %v762, %v843
    %v845 = vpop.f32.mrb[0].mxu0
    %846 = vmatprep.mubr.f32.mxu0 0.0
    %847 = vmatmul.mubr.f32.gmra.mrb[0].mxu0 %v769
    %v848 = vpop.f32.mrb[0].mxu0
    %v849 = vadd.f32 %v762, %v848
    %v850 = vpop.f32.mrb[0].mxu0
    %851 = vmatprep.mubr.f32.mxu0 0.0
    %852 = vmatmul.mubr.f32.gmra.mrb[0].mxu0 %v772
    %v853 = vpop.f32.mrb[0].mxu0
    %v854 = vadd.f32 %v762, %v853
    %v855 = vpop.f32.mrb[0].mxu0
    %856 = vmatprep.mubr.f32.mxu0 0.0
    %857 = vmatmul.mubr.f32.gmra.mrb[0].mxu0 %v775
    %v858 = vpop.f32.mrb[0].mxu0
    %v859 = vadd.f32 %v762, %v858
    %v860 = vpop.f32.mrb[0].mxu0
    %861 = vdwg.mxu0
    %v862 = vtanh.pop %v844
    %v863 = vtanh.pop %v849
    %v864 = vtanh.pop %v854
    %v865 = vtanh.pop %v859
    %v866 = vsel %vm494, %v862, 0.0
    %v867 = vsel %vm494, %v863, 0.0
    %v868 = vadd.f32 %v866, %v867
    %v869 = vsel %vm494, %v864, 0.0
    %v870 = vadd.f32 %v868, %v869
    %v871 = vsel %vm494, %v865, 0.0
    %v872 = vadd.f32 %v870, %v871
    %v873 = vrot.slane %v872, 4
    %v874 = vadd.f32 %v872, %v873
    %v875 = vrot.slane %v874, 2
    %v876 = vadd.f32 %v874, %v875
    %v877 = vrot.slane %v876, 1
    %v878 = vadd.f32 %v876, %v877
    %v879 = vmul.f32 %v878, %v508
    %v880 = vsub.f32 %v862, %v879
    %v881 = vsub.f32 %v863, %v879
    %v882 = vsub.f32 %v864, %v879
    %v883 = vsub.f32 %v865, %v879
    %v884 = vmul.f32 %v880, %v880
    %v885 = vmul.f32 %v881, %v881
    %v886 = vmul.f32 %v882, %v882
    %v887 = vmul.f32 %v883, %v883
    %v888 = vsel %vm494, %v884, 0.0
    %v889 = vsel %vm494, %v885, 0.0
    %v890 = vadd.f32 %v888, %v889
    %v891 = vsel %vm494, %v886, 0.0
    %v892 = vadd.f32 %v890, %v891
    %v893 = vsel %vm494, %v887, 0.0
    %v894 = vadd.f32 %v892, %v893
    %v895 = vrot.slane %v894, 4
    %v896 = vadd.f32 %v894, %v895
    %v897 = vrot.slane %v896, 2
    %v898 = vadd.f32 %v896, %v897
    %v899 = vrot.slane %v898, 1
    %v900 = vadd.f32 %v898, %v899
    %v901 = vmul.f32 %v900, %v508
    %v902 = vadd.f32 %v901, 1e-05
    %v903 = vrsqrt.pop %v902
    %v904 = vmul.f32 %v880, %v903
    %v905 = vmul.f32 %v881, %v903
    %v906 = vmul.f32 %v882, %v903
    %v907 = vmul.f32 %v883, %v903
    %v908 = vld [vmem:[#allocation13] sm:$0xff]
    %vm909 = vcmask 261120
    %v911 = vsel %vm909, %v908, 0
    %913 = vmatprep.subr.mxu0 0.0
    %914 = vmatpush1.msra.mxu0 %v904
    %915 = vmatprep.subr.mxu0 0.0
    %916 = vmatpush1.msra.mxu0 %v905
    %917 = vmatprep.subr.mxu0 0.0
    %918 = vmatpush1.msra.mxu0 %v906
    %919 = vmatprep.subr.mxu0 0.0
    %920 = vmatpush1.msra.mxu0 %v907
    %921 = vmatprep.subr.mxu0 0.0
    %922 = vmatpush1.msra.mxu0 0.0
    %923 = vmatprep.subr.mxu0 0.0
    %924 = vmatpush1.msra.mxu0 0.0
    %925 = vmatprep.subr.mxu0 0.0
    %926 = vmatpush1.msra.mxu0 0.0
    %927 = vmatprep.subr.mxu0 0.0
    %928 = vmatpush1.msra.mxu0 0.0
    %929 = vmatprep.subr.mxu0 0.0
    %930 = vmatpush1.msra.mxu0 0.0
    %931 = vmatprep.subr.mxu0 0.0
    %932 = vmatpush1.msra.mxu0 0.0
    %933 = vmatprep.subr.mxu0 0.0
    %934 = vmatpush1.msra.mxu0 0.0
    %935 = vmatprep.subr.mxu0 0.0
    %936 = vmatpush1.msra.mxu0 0.0
    %937 = vmatprep.subr.mxu0 0.0
    %938 = vmatpush1.msra.mxu0 0.0
    %939 = vmatprep.subr.mxu0 0.0
    %940 = vmatpush1.msra.mxu0 0.0
    %941 = vmatprep.subr.mxu0 0.0
    %942 = vmatpush1.msra.mxu0 0.0
    %943 = vmatprep.subr.mxu0 0.0
    %944 = vmatpush1.msra.mxu0 0.0
    %945 = vmatprep.subr.mxu0 0.0
    %946 = vmatpush1.msra.mxu0 0.0
    %947 = vmatprep.subr.mxu0 0.0
    %948 = vmatpush1.msra.mxu0 0.0
    %949 = vmatprep.subr.mxu0 0.0
    %950 = vmatpush1.msra.mxu0 0.0
    %951 = vmatprep.subr.mxu0 0.0
    %952 = vmatpush1.msra.mxu0 0.0
    %953 = vmatprep.subr.mxu0 0.0
    %954 = vmatpush1.msra.mxu0 0.0
    %955 = vmatprep.subr.mxu0 0.0
    %956 = vmatpush1.msra.mxu0 0.0
    %957 = vmatprep.subr.mxu0 0.0
    %958 = vmatpush1.msra.mxu0 0.0
    %959 = vmatprep.subr.mxu0 0.0
    %960 = vmatpush1.msra.mxu0 0.0
    %961 = vmatprep.subr.mxu0 0.0
    %962 = vmatpush1.msra.mxu0 0.0
    %963 = vmatprep.subr.mxu0 0.0
    %964 = vmatpush1.msra.mxu0 0.0
    %965 = vmatprep.subr.mxu0 0.0
    %966 = vmatpush1.msra.mxu0 0.0
    %967 = vmatprep.subr.mxu0 0.0
    %968 = vmatpush1.msra.mxu0 0.0
    %969 = vmatprep.subr.mxu0 0.0
    %970 = vmatpush1.msra.mxu0 0.0
    %971 = vmatprep.subr.mxu0 0.0
    %972 = vmatpush1.msra.mxu0 0.0
    %973 = vmatprep.subr.mxu0 0.0
    %974 = vmatpush1.msra.mxu0 0.0
    %975 = vmatprep.subr.mxu0 0.0
    %976 = vmatpush1.msra.mxu0 0.0
    %977 = vmatprep.mubr.f32.mxu0 0.0
    %978 = vmatmul.mubr.f32.gmra.mrb[0].mxu0 %v911
    %v979 = vpop.f32.mrb[0].mxu0
    %v980 = vadd.f32 0.0, %v979
    %v981 = vpop.f32.mrb[0].mxu0
    %982 = vdwg.mxu0
    %983 = vst.msk [vmem:[#allocation16] sm:$0xff] %vm494, %v980
    %v984 = vld [vmem:[#allocation14] sm:$0xff]
    %v986 = vsel %vm909, %v984, 0
    %988 = vmatprep.subr.mxu0 0.0
    %989 = vmatpush1.msra.mxu0 %v904
    %990 = vmatprep.subr.mxu0 0.0
    %991 = vmatpush1.msra.mxu0 %v905
    %992 = vmatprep.subr.mxu0 0.0
    %993 = vmatpush1.msra.mxu0 %v906
    %994 = vmatprep.subr.mxu0 0.0
    %995 = vmatpush1.msra.mxu0 %v907
    %996 = vmatprep.subr.mxu0 0.0
    %997 = vmatpush1.msra.mxu0 0.0
    %998 = vmatprep.subr.mxu0 0.0
    %999 = vmatpush1.msra.mxu0 0.0
    %1000 = vmatprep.subr.mxu0 0.0
    %1001 = vmatpush1.msra.mxu0 0.0
    %1002 = vmatprep.subr.mxu0 0.0
    %1003 = vmatpush1.msra.mxu0 0.0
    %1004 = vmatprep.subr.mxu0 0.0
    %1005 = vmatpush1.msra.mxu0 0.0
    %1006 = vmatprep.subr.mxu0 0.0
    %1007 = vmatpush1.msra.mxu0 0.0
    %1008 = vmatprep.subr.mxu0 0.0
    %1009 = vmatpush1.msra.mxu0 0.0
    %1010 = vmatprep.subr.mxu0 0.0
    %1011 = vmatpush1.msra.mxu0 0.0
    %1012 = vmatprep.subr.mxu0 0.0
    %1013 = vmatpush1.msra.mxu0 0.0
    %1014 = vmatprep.subr.mxu0 0.0
    %1015 = vmatpush1.msra.mxu0 0.0
    %1016 = vmatprep.subr.mxu0 0.0
    %1017 = vmatpush1.msra.mxu0 0.0
    %1018 = vmatprep.subr.mxu0 0.0
    %1019 = vmatpush1.msra.mxu0 0.0
    %1020 = vmatprep.subr.mxu0 0.0
    %1021 = vmatpush1.msra.mxu0 0.0
    %1022 = vmatprep.subr.mxu0 0.0
    %1023 = vmatpush1.msra.mxu0 0.0
    %1024 = vmatprep.subr.mxu0 0.0
    %1025 = vmatpush1.msra.mxu0 0.0
    %1026 = vmatprep.subr.mxu0 0.0
    %1027 = vmatpush1.msra.mxu0 0.0
    %1028 = vmatprep.subr.mxu0 0.0
    %1029 = vmatpush1.msra.mxu0 0.0
    %1030 = vmatprep.subr.mxu0 0.0
    %1031 = vmatpush1.msra.mxu0 0.0
    %1032 = vmatprep.subr.mxu0 0.0
    %1033 = vmatpush1.msra.mxu0 0.0
    %1034 = vmatprep.subr.mxu0 0.0
    %1035 = vmatpush1.msra.mxu0 0.0
    %1036 = vmatprep.subr.mxu0 0.0
    %1037 = vmatpush1.msra.mxu0 0.0
    %1038 = vmatprep.subr.mxu0 0.0
    %1039 = vmatpush1.msra.mxu0 0.0
    %1040 = vmatprep.subr.mxu0 0.0
    %1041 = vmatpush1.msra.mxu0 0.0
    %1042 = vmatprep.subr.mxu0 0.0
    %1043 = vmatpush1.msra.mxu0 0.0
    %1044 = vmatprep.subr.mxu0 0.0
    %1045 = vmatpush1.msra.mxu0 0.0
    %1046 = vmatprep.subr.mxu0 0.0
    %1047 = vmatpush1.msra.mxu0 0.0
    %1048 = vmatprep.subr.mxu0 0.0
    %1049 = vmatpush1.msra.mxu0 0.0
    %1050 = vmatprep.subr.mxu0 0.0
    %1051 = vmatpush1.msra.mxu0 0.0
    %1052 = vmatprep.mubr.f32.mxu0 0.0
    %1053 = vmatmul.mubr.f32.gmra.mrb[0].mxu0 %v986
    %v1054 = vpop.f32.mrb[0].mxu0
    %v1055 = vadd.f32 0.0, %v1054
    %v1056 = vpop.f32.mrb[0].mxu0
    %1057 = vdwg.mxu0
    %1058 = vst.msk [vmem:[#allocation17] sm:$0xff] %vm494, %v1055
    // Predicated region
    $region66: #{tpu_custom_call.1} parent=1 // pred_check
      _
    $region67: #{tpu_custom_call.1} parent=1 // pred_check_branch
      %1060 = sbr.rel (0) target = $region69
    $region68: #{tpu_custom_call.1} parent=1 // pred_region
      %s1062 = ssub.s32 128, 128
      %1063 = vsyncadd [#allocation4], %s1062
      %s1065 = sshll.u32 [#allocation16], 4
      %s1066 = int_to_ptr.vmem [resolvable:$true] %s1065
      %1068 = dma.vmem_to_hbm [thread:$0]  %s1066, 128, %s8, [#allocation4]
    $region69: #{tpu_custom_call.1} parent=1 // pred_fallthru
      _
    // Predicated region
    $region70: #{tpu_custom_call.1} parent=1 // pred_check
      _
    $region71: #{tpu_custom_call.1} parent=1 // pred_check_branch
      %1070 = sbr.rel (0) target = $region73
    $region72: #{tpu_custom_call.1} parent=1 // pred_region
      %s1072 = ssub.s32 128, 128
      %1073 = vsyncadd [#allocation18], %s1072
      %s1075 = sshll.u32 [#allocation17], 4
      %s1076 = int_to_ptr.vmem [resolvable:$true] %s1075
      %1078 = dma.vmem_to_hbm [thread:$0]  %s1076, 128, %s9, [#allocation18]
    $region73: #{tpu_custom_call.1} parent=1 // pred_fallthru
      _
    // Predicated region
    $region74: #{tpu_custom_call.1} parent=1 // pred_check
      _
    $region75: #{tpu_custom_call.1} parent=1 // pred_check_branch
      %1080 = sbr.rel (0) target = $region77
    $region76: #{tpu_custom_call.1} parent=1 // pred_region
      %1081 = dma.done [#allocation4], 128
    $region77: #{tpu_custom_call.1} parent=1 // pred_fallthru
      _
    // Predicated region
    $region78: #{tpu_custom_call.1} parent=1 // pred_check
      _
    $region79: #{tpu_custom_call.1} parent=1 // pred_check_branch
      %1083 = sbr.rel (0) target = $region81
    $region80: #{tpu_custom_call.1} parent=1 // pred_region
      %1084 = dma.done [#allocation18], 128
    $region81: #{tpu_custom_call.1} parent=1 // pred_fallthru
      _
    %1085 = vsyncpa [#allocation3], 1
    %1086 = vsyncpa [#allocation6], 1
    %1087 = vsyncpa [#allocation9], 1
    %1088 = vsyncpa [#allocation12], 1
    %1089 = vsyncpa [#allocation15], 1
    %1090 = vsyncpa [#allocation4], 1
    %1091 = vsyncpa [#allocation18], 1

</llo_original>
